<compile_context>
chip_gen: v7x
topology: tpu7x:2x2x1
jax: 0.10.0
libtpu: 0.0.40
codegen_flags: <defaults>
</compile_context>

<pallas_src>
import jax
import jax.numpy as jnp
from jax import lax
from jax.experimental import pallas as pl
from jax.experimental.pallas import tpu as pltpu


def _make_decoder_kernel(S, S_pad, H1, H2):
    """Build the fused lstm1 -> lstm2 -> linear kernel for one block of latents."""

    def kernel(x_ref, wih1_ref, b1_ref, wstk_ref, b2_ref, woutv_ref, bout_ref,
               out_ref):
        BM = x_ref.shape[0]                       # latents in this block
        mm = wstk_ref.dtype                       # matmul operand dtype
        cast = (lambda v: v) if mm == jnp.float32 else (lambda v: v.astype(mm))

        def cell_ifgo(gates, c_prev, H):
            # Layer 1: PyTorch (i, f, g, o) order; 4*H1 lanes == one vreg, so a
            # full-width sigmoid is the cheapest option.
            sig = jax.nn.sigmoid(gates)
            i = sig[:, 0:H]
            f = sig[:, H:2 * H]
            o = sig[:, 3 * H:4 * H]
            g = jnp.tanh(gates[:, 2 * H:3 * H])
            c = f * c_prev + i * g
            return o * jnp.tanh(c), c

        def cell_ifog(gates, c_prev, H):
            # Layer 2: columns pre-permuted to (i, f, o, g) in the wrapper, so the
            # sigmoid covers only the contiguous i/f/o range (no wasted EUP lanes).
            sig = jax.nn.sigmoid(gates[:, 0:3 * H])
            i = sig[:, 0:H]
            f = sig[:, H:2 * H]
            o = sig[:, 2 * H:3 * H]
            g = jnp.tanh(gates[:, 3 * H:4 * H])
            c = f * c_prev + i * g
            return o * jnp.tanh(c), c

        # x is constant over time (PyTorch repeats the latent): layer-1 input
        # projection + bias is computed once, outside the recurrence.
        xg1 = jnp.dot(cast(x_ref[...]), wih1_ref[...],
                      preferred_element_type=jnp.float32) + b1_ref[...]
        b2 = b2_ref[...]
        wv = woutv_ref[...]                       # (1, H2) output weight row

        # t = 0, layer 1: h1_{-1} = 0 so the recurrent term vanishes.
        h1, c1 = cell_ifgo(xg1, jnp.zeros((BM, H1), jnp.float32), H1)
        h2 = jnp.zeros((BM, H2), jnp.float32)
        c2 = jnp.zeros((BM, H2), jnp.float32)

        # Lane-dense output accumulator: column t holds the step-t prediction.
        lane = lax.broadcasted_iota(jnp.int32, (BM, S_pad), 1)
        acc = jnp.zeros((BM, S_pad), jnp.float32)

        # Skewed, fully unrolled recurrence: one fused (BM, H1+H2)@(H1+H2, 4H1+4H2)
        # MXU push per step produces both layer-2 gates for step t and the layer-1
        # recurrent contribution for step t+1.  S is small and static, so a Python
        # for-loop gives the LLO scheduler the whole unrolled chain.
        for t in range(S):
            hcat = cast(jnp.concatenate([h1, h2], axis=1))        # (BM, H1+H2)
            fused = jnp.dot(hcat, wstk_ref[...],
                            preferred_element_type=jnp.float32)   # (BM, 4H1+4H2)
            # layer 2, step t (gate slice starts at lane 4*H1 -> vreg aligned)
            h2, c2 = cell_ifog(fused[:, 4 * H1:] + b2, c2, H2)
            # Output projection (off the recurrence chain): VPU broadcast-multiply
            # + XLU lane reduction, placed into lane t of the dense accumulator.
            # TODO(synk): assumes n_features == 1 (module default); general
            # n_features needs F reductions or an MXU projection.
            val = jnp.sum(h2 * wv, axis=1, keepdims=True)          # (BM, 1)
            acc = jnp.where(lane == t, val, acc)
            # layer 1, step t+1 (skipped after the last step)
            if t < S - 1:
                h1, c1 = cell_ifgo(xg1 + fused[:, 0:4 * H1], c1, H1)

        # Single unmasked, lane-dense (BM, S_pad) store.
        out_ref[...] = acc + bout_ref[...]

    return kernel


def _reorder_ifgo_to_ifog(w, H):
    """Permute LSTM gate columns (i, f, g, o) -> (i, f, o, g)."""
    return jnp.concatenate([w[:, :2 * H], w[:, 3 * H:4 * H], w[:, 2 * H:3 * H]],
                           axis=1)


def decoder_forward(x, params, *, seq_len, input_dim, n_features=1,
                    block_b=64, mm_dtype=jnp.float32):
    """Decode B independent latents with the Decoder module semantics.

    x: (B, input_dim).  Returns (B, seq_len, n_features).  B == 1 is exactly the
    PyTorch module's forward (its input is (n_features=1, input_dim)).

    block_b: latents per grid step (sweepable; larger fills more of the MXU M
    dimension at the cost of register pressure).  mm_dtype=jnp.bfloat16 enables
    bf16 MXU operands (worthwhile on v6e/v7x only when M is batched); states,
    gates and accumulation always stay fp32.
    """
    assert n_features == 1, "reference module is used with n_features=1"
    B = x.shape[0]
    assert x.shape == (B, input_dim)
    H1, H2 = input_dim, 2 * input_dim
    S = seq_len
    S_pad = max(128, pl.cdiv(S, 128) * 128)       # lane-dense (time-major) output

    # Latent-block size / padding for the grid axis.
    if B <= block_b:
        bm, B_pad = B, B
    else:
        assert block_b % 8 == 0, "block_b must be a multiple of 8 when B > block_b"
        bm = block_b
        B_pad = pl.cdiv(B, bm) * bm
    G = B_pad // bm

    xf = x.astype(jnp.float32)
    if B_pad != B:
        xf = jnp.concatenate(
            [xf, jnp.zeros((B_pad - B, input_dim), jnp.float32)], axis=0)

    # Stacked recurrent weight:  [h1_t | h2_{t-1}] @ W_stk =
    #   [ h1_t @ whh1  |  h1_t @ wih2 + h2_{t-1} @ whh2 ]
    # The (H2, 4*H1) block is exactly zero, so layer-1 gates are unaffected by h2.
    # Layer-2 gate columns are permuted to (i, f, o, g) — see cell_ifog.
    wstk = jnp.zeros((H1 + H2, 4 * H1 + 4 * H2), jnp.float32)
    wstk = wstk.at[:H1, :4 * H1].set(params["whh1"].astype(jnp.float32))
    wstk = wstk.at[:H1, 4 * H1:].set(
        _reorder_ifgo_to_ifog(params["wih2"].astype(jnp.float32), H2))
    wstk = wstk.at[H1:, 4 * H1:].set(
        _reorder_ifgo_to_ifog(params["whh2"].astype(jnp.float32), H2))
    b2r = _reorder_ifgo_to_ifog(params["b2"].astype(jnp.float32), H2)

    woutv = params["wout"].astype(jnp.float32).T               # (1, H2)
    boutr = jnp.broadcast_to(
        params["bout"].astype(jnp.float32).reshape(1, 1), (1, S_pad))

    kernel = _make_decoder_kernel(S, S_pad, H1, H2)

    def w_spec(shape):
        # Constant block index -> weight stays resident in VMEM across the grid.
        return pl.BlockSpec(shape, lambda g: (0, 0))

    out_raw = pl.pallas_call(
        kernel,
        out_shape=jax.ShapeDtypeStruct((B_pad, S_pad), jnp.float32),
        grid=(G,),
        in_specs=[
            pl.BlockSpec((bm, input_dim), lambda g: (g, 0)),    # latent block
            w_spec((input_dim, 4 * H1)),                        # wih1
            w_spec((1, 4 * H1)),                                # b1
            w_spec((H1 + H2, 4 * H1 + 4 * H2)),                 # stacked recurrent
            w_spec((1, 4 * H2)),                                # b2 (reordered)
            w_spec((1, H2)),                                    # wout row
            w_spec((1, S_pad)),                                 # bout broadcast
        ],
        out_specs=pl.BlockSpec((bm, S_pad), lambda g: (g, 0)),
        compiler_params=pltpu.CompilerParams(
            dimension_semantics=("parallel",)),                 # both TCs on v7x
    )(xf,
      params["wih1"].astype(mm_dtype), params["b1"].astype(jnp.float32),
      wstk.astype(mm_dtype), b2r,
      woutv, boutr)

    # (B_pad, S_pad) time-major lane layout -> (B, seq_len, n_features)
    return out_raw[:B, :S].reshape(B, S, n_features)


# ----------------------- pure-JAX reference (for checking) -----------------------
def _lstm_ref(xs, wih_t, whh_t, b, H, mm_dtype):
    wih = wih_t.astype(mm_dtype)
    whh = whh_t.astype(mm_dtype)

    def step(carry, x_t):
        h, c = carry
        g = (jnp.dot(x_t.astype(mm_dtype), wih, preferred_element_type=jnp.float32)
             + b[0]
             + jnp.dot(h.astype(mm_dtype), whh, preferred_element_type=jnp.float32))
        i = jax.nn.sigmoid(g[0:H])
        f = jax.nn.sigmoid(g[H:2 * H])
        gg = jnp.tanh(g[2 * H:3 * H])
        o = jax.nn.sigmoid(g[3 * H:4 * H])
        c = f * c + i * gg
        h = o * jnp.tanh(c)
        return (h, c), h

    (_, _), hs = lax.scan(step, (jnp.zeros(H, jnp.float32),
                                 jnp.zeros(H, jnp.float32)), xs)
    return hs


def decoder_ref_single(x1, params, *, seq_len, input_dim, n_features=1,
                       mm_dtype=jnp.float32):
    """x1: (n_features, input_dim) — exactly Decoder.forward for one latent."""
    hidden_dim = 2 * input_dim
    xs = jnp.tile(x1, (seq_len, n_features)).reshape(
        (n_features, seq_len, input_dim))[0]
    h1 = _lstm_ref(xs, params["wih1"], params["whh1"], params["b1"],
                   input_dim, mm_dtype)
    h2 = _lstm_ref(h1, params["wih2"], params["whh2"], params["b2"],
                   hidden_dim, mm_dtype)
    # Output projection stays fp32 (the kernel keeps it fp32 as well).
    return (jnp.dot(h2, params["wout"].astype(jnp.float32),
                    preferred_element_type=jnp.float32) + params["bout"])


def decoder_ref(x, params, **kw):
    return jax.vmap(lambda xi: decoder_ref_single(xi[None, :], params, **kw))(x)


if __name__ == "__main__":
    SEQ_LEN, INPUT_DIM, N_FEATURES = 8, 32, 1
    HIDDEN_DIM = 2 * INPUT_DIM
    BATCH = 12      # independent latents; exercises padding (->16) and a 2-block grid
    BLOCK_B = 8

    key = jax.random.PRNGKey(0)
    kx, *kp = jax.random.split(key, 12)

    def uni(k, shape, bound):
        return jax.random.uniform(k, shape, jnp.float32, -bound, bound)

    s1 = INPUT_DIM ** -0.5      # PyTorch LSTM init bound: 1/sqrt(hidden_size)
    s2 = HIDDEN_DIM ** -0.5
    so = HIDDEN_DIM ** -0.5     # nn.Linear init bound: 1/sqrt(fan_in)

    params = {
        # lstm1: hidden = INPUT_DIM
        "wih1": uni(kp[0], (INPUT_DIM, 4 * INPUT_DIM), s1),   # W_ih^T
        "whh1": uni(kp[1], (INPUT_DIM, 4 * INPUT_DIM), s1),   # W_hh^T
        "b1": uni(kp[2], (1, 4 * INPUT_DIM), s1)
              + uni(kp[3], (1, 4 * INPUT_DIM), s1),           # b_ih + b_hh
        # lstm2: hidden = 2 * INPUT_DIM
        "wih2": uni(kp[4], (INPUT_DIM, 4 * HIDDEN_DIM), s2),
        "whh2": uni(kp[5], (HIDDEN_DIM, 4 * HIDDEN_DIM), s2),
        "b2": uni(kp[6], (1, 4 * HIDDEN_DIM), s2)
              + uni(kp[7], (1, 4 * HIDDEN_DIM), s2),
        # output linear
        "wout": uni(kp[8], (HIDDEN_DIM, N_FEATURES), so),     # W^T
        "bout": uni(kp[9], (1, N_FEATURES), so),
    }

    # B independent latents (each row is one (1, input_dim) decoder input).
    x = jax.random.normal(kx, (BATCH, INPUT_DIM), jnp.float32)

    # ---- fp32 path: check against the pure-JAX reference.  Tolerance 1e-4
    # because the fused stacked matmul / VPU projection change accumulation
    # grouping by a few ulps; any real bug would be orders of magnitude larger.
    out_f32 = decoder_forward(x, params, seq_len=SEQ_LEN, input_dim=INPUT_DIM,
                              n_features=N_FEATURES, block_b=BLOCK_B,
                              mm_dtype=jnp.float32)
    out_f32 = jax.block_until_ready(out_f32)
    ref_f32 = decoder_ref(x, params, seq_len=SEQ_LEN, input_dim=INPUT_DIM,
                          n_features=N_FEATURES, mm_dtype=jnp.float32)
    assert out_f32.shape == (BATCH, SEQ_LEN, N_FEATURES)
    assert jnp.allclose(out_f32, ref_f32, atol=1e-4, rtol=1e-4), \
        "fp32 kernel mismatch vs JAX reference"

    # ---- B == 1 path == the PyTorch module call exactly.
    out_one = decoder_forward(x[:1], params, seq_len=SEQ_LEN, input_dim=INPUT_DIM,
                              n_features=N_FEATURES)
    out_one = jax.block_until_ready(out_one)
    assert jnp.allclose(out_one[0], ref_f32[0], atol=1e-4, rtol=1e-4), \
        "single-latent kernel mismatch vs JAX reference"

    # ---- bf16 MXU-operand path (v6e/v7x, batched M): compare against a reference
    # that applies the same bf16 operand rounding (fp32 accumulation/states).
    out_bf16 = decoder_forward(x, params, seq_len=SEQ_LEN, input_dim=INPUT_DIM,
                               n_features=N_FEATURES, block_b=BLOCK_B,
                               mm_dtype=jnp.bfloat16)
    out_bf16 = jax.block_until_ready(out_bf16)
    ref_bf16 = decoder_ref(x, params, seq_len=SEQ_LEN, input_dim=INPUT_DIM,
                           n_features=N_FEATURES, mm_dtype=jnp.bfloat16)
    # 1e-2 bounds bf16 operand-rounding divergence over 8 recurrent steps; real
    # bugs would be orders of magnitude larger.
    assert jnp.allclose(out_bf16, ref_bf16, atol=1e-2, rtol=1e-2), \
        "bf16 kernel mismatch vs bf16 JAX reference"
    # sanity: bf16 path stays close to the full-fp32 result
    assert jnp.allclose(out_bf16, ref_f32, atol=1e-1), \
        "bf16 kernel drifted too far from fp32 reference"

    print("KERNEL_OK")
</pallas_src>

<mosaic_0001>
module attributes {stable_mosaic.version = 11 : i64} {
  func.func @kernel(%arg0: i32, %arg1: memref<8x32xf32, #tpu.memory_space<vmem>>, %arg2: memref<32x128xf32, #tpu.memory_space<vmem>>, %arg3: memref<1x128xf32, #tpu.memory_space<vmem>>, %arg4: memref<96x384xf32, #tpu.memory_space<vmem>>, %arg5: memref<1x256xf32, #tpu.memory_space<vmem>>, %arg6: memref<1x64xf32, #tpu.memory_space<vmem>>, %arg7: memref<1x128xf32, #tpu.memory_space<vmem>>, %arg8: memref<8x128xf32, #tpu.memory_space<vmem>>) attributes {dimension_semantics = [#tpu.dimension_semantics<parallel>], iteration_bounds = array<i64: 2>, scalar_prefetch = 0 : i64, scratch_operands = 0 : i64, tpu.core_type = #tpu.core_type<tc>, window_params = [{transform_indices = @transform_0, window_bounds = array<i64: 8, 32>}, {pipeline_mode = #tpu.pipeline_mode<synchronous>, transform_indices = @transform_1, window_bounds = array<i64: 32, 128>}, {pipeline_mode = #tpu.pipeline_mode<synchronous>, transform_indices = @transform_2, window_bounds = array<i64: 1, 128>}, {pipeline_mode = #tpu.pipeline_mode<synchronous>, transform_indices = @transform_3, window_bounds = array<i64: 96, 384>}, {pipeline_mode = #tpu.pipeline_mode<synchronous>, transform_indices = @transform_4, window_bounds = array<i64: 1, 256>}, {pipeline_mode = #tpu.pipeline_mode<synchronous>, transform_indices = @transform_5, window_bounds = array<i64: 1, 64>}, {pipeline_mode = #tpu.pipeline_mode<synchronous>, transform_indices = @transform_6, window_bounds = array<i64: 1, 128>}, {transform_indices = @transform_7, window_bounds = array<i64: 8, 128>}]} {
    %c0 = arith.constant 0 : index
    %c0_0 = arith.constant 0 : index
    %0 = vector.load %arg1[%c0, %c0_0] : memref<8x32xf32, #tpu.memory_space<vmem>>, vector<8x32xf32>
    %c0_1 = arith.constant 0 : index
    %c0_2 = arith.constant 0 : index
    %1 = vector.load %arg2[%c0_1, %c0_2] : memref<32x128xf32, #tpu.memory_space<vmem>>, vector<32x128xf32>
    %cst = arith.constant dense<0.000000e+00> : vector<8x128xf32>
    %2 = tpu.matmul %0, %1, %cst {dimension_numbers = #tpu.dot_dimension_numbers<[1], [0], [0], [1], [0, 0, 1, 1], [], []>} : vector<8x32xf32>, vector<32x128xf32>, vector<8x128xf32> -> vector<8x128xf32>
    %c0_3 = arith.constant 0 : index
    %c0_4 = arith.constant 0 : index
    %3 = vector.load %arg3[%c0_3, %c0_4] : memref<1x128xf32, #tpu.memory_space<vmem>>, vector<1x128xf32>
    %4 = vector.broadcast %3 : vector<1x128xf32> to vector<8x128xf32>
    %5 = arith.addf %2, %4 : vector<8x128xf32>
    %c0_5 = arith.constant 0 : index
    %c0_6 = arith.constant 0 : index
    %6 = vector.load %arg5[%c0_5, %c0_6] : memref<1x256xf32, #tpu.memory_space<vmem>>, vector<1x256xf32>
    %c0_7 = arith.constant 0 : index
    %c0_8 = arith.constant 0 : index
    %7 = vector.load %arg6[%c0_7, %c0_8] : memref<1x64xf32, #tpu.memory_space<vmem>>, vector<1x64xf32>
    %cst_9 = arith.constant 0.000000e+00 : f32
    %8 = vector.broadcast %cst_9 : f32 to vector<8x32xf32>
    %9 = arith.negf %5 : vector<8x128xf32>
    %10 = math.exp %9 : vector<8x128xf32>
    %cst_10 = arith.constant 1.000000e+00 : f32
    %11 = vector.broadcast %cst_10 : f32 to vector<8x128xf32>
    %12 = arith.addf %11, %10 : vector<8x128xf32>
    %13 = arith.divf %11, %12 : vector<8x128xf32>
    %14 = vector.extract_strided_slice %13 {offsets = [0, 0], sizes = [8, 32], strides = [1, 1]} : vector<8x128xf32> to vector<8x32xf32>
    %15 = vector.extract_strided_slice %13 {offsets = [0, 32], sizes = [8, 32], strides = [1, 1]} : vector<8x128xf32> to vector<8x32xf32>
    %16 = vector.extract_strided_slice %13 {offsets = [0, 96], sizes = [8, 32], strides = [1, 1]} : vector<8x128xf32> to vector<8x32xf32>
    %17 = vector.extract_strided_slice %5 {offsets = [0, 64], sizes = [8, 32], strides = [1, 1]} : vector<8x128xf32> to vector<8x32xf32>
    %18 = math.tanh %17 : vector<8x32xf32>
    %19 = arith.mulf %15, %8 : vector<8x32xf32>
    %20 = arith.mulf %14, %18 : vector<8x32xf32>
    %21 = arith.addf %19, %20 : vector<8x32xf32>
    %22 = math.tanh %21 : vector<8x32xf32>
    %23 = arith.mulf %16, %22 : vector<8x32xf32>
    %cst_11 = arith.constant 0.000000e+00 : f32
    %24 = vector.broadcast %cst_11 : f32 to vector<8x64xf32>
    %cst_12 = arith.constant 0.000000e+00 : f32
    %25 = vector.broadcast %cst_12 : f32 to vector<8x64xf32>
    %26 = tpu.iota {dimensions = array<i32: 1>} : vector<8x128xi32>
    %cst_13 = arith.constant 0.000000e+00 : f32
    %27 = vector.broadcast %cst_13 : f32 to vector<8x128xf32>
    %28 = tpu.concatenate %23, %24 in 1 : vector<8x32xf32>, vector<8x64xf32> -> vector<8x96xf32>
    %c0_14 = arith.constant 0 : index
    %c0_15 = arith.constant 0 : index
    %29 = vector.load %arg4[%c0_14, %c0_15] : memref<96x384xf32, #tpu.memory_space<vmem>>, vector<96x384xf32>
    %cst_16 = arith.constant dense<0.000000e+00> : vector<8x384xf32>
    %30 = tpu.matmul %28, %29, %cst_16 {dimension_numbers = #tpu.dot_dimension_numbers<[1], [0], [0], [1], [0, 0, 1, 1], [], []>} : vector<8x96xf32>, vector<96x384xf32>, vector<8x384xf32> -> vector<8x384xf32>
    %31 = vector.extract_strided_slice %30 {offsets = [0, 128], sizes = [8, 256], strides = [1, 1]} : vector<8x384xf32> to vector<8x256xf32>
    %32 = vector.broadcast %6 : vector<1x256xf32> to vector<8x256xf32>
    %33 = arith.addf %31, %32 : vector<8x256xf32>
    %34 = vector.extract_strided_slice %33 {offsets = [0, 0], sizes = [8, 192], strides = [1, 1]} : vector<8x256xf32> to vector<8x192xf32>
    %35 = arith.negf %34 : vector<8x192xf32>
    %36 = math.exp %35 : vector<8x192xf32>
    %cst_17 = arith.constant 1.000000e+00 : f32
    %37 = vector.broadcast %cst_17 : f32 to vector<8x192xf32>
    %38 = arith.addf %37, %36 : vector<8x192xf32>
    %39 = arith.divf %37, %38 : vector<8x192xf32>
    %40 = vector.extract_strided_slice %39 {offsets = [0, 0], sizes = [8, 64], strides = [1, 1]} : vector<8x192xf32> to vector<8x64xf32>
    %41 = vector.extract_strided_slice %39 {offsets = [0, 64], sizes = [8, 64], strides = [1, 1]} : vector<8x192xf32> to vector<8x64xf32>
    %42 = vector.extract_strided_slice %39 {offsets = [0, 128], sizes = [8, 64], strides = [1, 1]} : vector<8x192xf32> to vector<8x64xf32>
    %43 = vector.extract_strided_slice %33 {offsets = [0, 192], sizes = [8, 64], strides = [1, 1]} : vector<8x256xf32> to vector<8x64xf32>
    %44 = math.tanh %43 : vector<8x64xf32>
    %45 = arith.mulf %41, %25 : vector<8x64xf32>
    %46 = arith.mulf %40, %44 : vector<8x64xf32>
    %47 = arith.addf %45, %46 : vector<8x64xf32>
    %48 = math.tanh %47 : vector<8x64xf32>
    %49 = arith.mulf %42, %48 : vector<8x64xf32>
    %50 = vector.broadcast %7 : vector<1x64xf32> to vector<8x64xf32>
    %51 = arith.mulf %49, %50 : vector<8x64xf32>
    %cst_18 = arith.constant dense<0.000000e+00> : vector<8xf32>
    %52 = vector.multi_reduction <add>, %51, %cst_18 [1] : vector<8x64xf32> to vector<8xf32>
    %53 = vector.shape_cast %52 : vector<8xf32> to vector<8x1xf32>
    %c0_i32 = arith.constant 0 : i32
    %54 = vector.broadcast %c0_i32 : i32 to vector<8x128xi32>
    %55 = arith.cmpi eq, %26, %54 : vector<8x128xi32>
    %56 = vector.shape_cast %53 : vector<8x1xf32> to vector<8x1xf32>
    %57 = vector.broadcast %56 : vector<8x1xf32> to vector<8x128xf32>
    %58 = arith.select %55, %57, %27 : vector<8x128xi1>, vector<8x128xf32>
    %59 = vector.extract_strided_slice %30 {offsets = [0, 0], sizes = [8, 128], strides = [1, 1]} : vector<8x384xf32> to vector<8x128xf32>
    %60 = arith.addf %5, %59 : vector<8x128xf32>
    %61 = arith.negf %60 : vector<8x128xf32>
    %62 = math.exp %61 : vector<8x128xf32>
    %cst_19 = arith.constant 1.000000e+00 : f32
    %63 = vector.broadcast %cst_19 : f32 to vector<8x128xf32>
    %64 = arith.addf %63, %62 : vector<8x128xf32>
    %65 = arith.divf %63, %64 : vector<8x128xf32>
    %66 = vector.extract_strided_slice %65 {offsets = [0, 0], sizes = [8, 32], strides = [1, 1]} : vector<8x128xf32> to vector<8x32xf32>
    %67 = vector.extract_strided_slice %65 {offsets = [0, 32], sizes = [8, 32], strides = [1, 1]} : vector<8x128xf32> to vector<8x32xf32>
    %68 = vector.extract_strided_slice %65 {offsets = [0, 96], sizes = [8, 32], strides = [1, 1]} : vector<8x128xf32> to vector<8x32xf32>
    %69 = vector.extract_strided_slice %60 {offsets = [0, 64], sizes = [8, 32], strides = [1, 1]} : vector<8x128xf32> to vector<8x32xf32>
    %70 = math.tanh %69 : vector<8x32xf32>
    %71 = arith.mulf %67, %21 : vector<8x32xf32>
    %72 = arith.mulf %66, %70 : vector<8x32xf32>
    %73 = arith.addf %71, %72 : vector<8x32xf32>
    %74 = math.tanh %73 : vector<8x32xf32>
    %75 = arith.mulf %68, %74 : vector<8x32xf32>
    %76 = tpu.concatenate %75, %49 in 1 : vector<8x32xf32>, vector<8x64xf32> -> vector<8x96xf32>
    %c0_20 = arith.constant 0 : index
    %c0_21 = arith.constant 0 : index
    %77 = vector.load %arg4[%c0_20, %c0_21] : memref<96x384xf32, #tpu.memory_space<vmem>>, vector<96x384xf32>
    %cst_22 = arith.constant dense<0.000000e+00> : vector<8x384xf32>
    %78 = tpu.matmul %76, %77, %cst_22 {dimension_numbers = #tpu.dot_dimension_numbers<[1], [0], [0], [1], [0, 0, 1, 1], [], []>} : vector<8x96xf32>, vector<96x384xf32>, vector<8x384xf32> -> vector<8x384xf32>
    %79 = vector.extract_strided_slice %78 {offsets = [0, 128], sizes = [8, 256], strides = [1, 1]} : vector<8x384xf32> to vector<8x256xf32>
    %80 = vector.broadcast %6 : vector<1x256xf32> to vector<8x256xf32>
    %81 = arith.addf %79, %80 : vector<8x256xf32>
    %82 = vector.extract_strided_slice %81 {offsets = [0, 0], sizes = [8, 192], strides = [1, 1]} : vector<8x256xf32> to vector<8x192xf32>
    %83 = arith.negf %82 : vector<8x192xf32>
    %84 = math.exp %83 : vector<8x192xf32>
    %cst_23 = arith.constant 1.000000e+00 : f32
    %85 = vector.broadcast %cst_23 : f32 to vector<8x192xf32>
    %86 = arith.addf %85, %84 : vector<8x192xf32>
    %87 = arith.divf %85, %86 : vector<8x192xf32>
    %88 = vector.extract_strided_slice %87 {offsets = [0, 0], sizes = [8, 64], strides = [1, 1]} : vector<8x192xf32> to vector<8x64xf32>
    %89 = vector.extract_strided_slice %87 {offsets = [0, 64], sizes = [8, 64], strides = [1, 1]} : vector<8x192xf32> to vector<8x64xf32>
    %90 = vector.extract_strided_slice %87 {offsets = [0, 128], sizes = [8, 64], strides = [1, 1]} : vector<8x192xf32> to vector<8x64xf32>
    %91 = vector.extract_strided_slice %81 {offsets = [0, 192], sizes = [8, 64], strides = [1, 1]} : vector<8x256xf32> to vector<8x64xf32>
    %92 = math.tanh %91 : vector<8x64xf32>
    %93 = arith.mulf %89, %47 : vector<8x64xf32>
    %94 = arith.mulf %88, %92 : vector<8x64xf32>
    %95 = arith.addf %93, %94 : vector<8x64xf32>
    %96 = math.tanh %95 : vector<8x64xf32>
    %97 = arith.mulf %90, %96 : vector<8x64xf32>
    %98 = vector.broadcast %7 : vector<1x64xf32> to vector<8x64xf32>
    %99 = arith.mulf %97, %98 : vector<8x64xf32>
    %cst_24 = arith.constant dense<0.000000e+00> : vector<8xf32>
    %100 = vector.multi_reduction <add>, %99, %cst_24 [1] : vector<8x64xf32> to vector<8xf32>
    %101 = vector.shape_cast %100 : vector<8xf32> to vector<8x1xf32>
    %c1_i32 = arith.constant 1 : i32
    %102 = vector.broadcast %c1_i32 : i32 to vector<8x128xi32>
    %103 = arith.cmpi eq, %26, %102 : vector<8x128xi32>
    %104 = vector.shape_cast %101 : vector<8x1xf32> to vector<8x1xf32>
    %105 = vector.broadcast %104 : vector<8x1xf32> to vector<8x128xf32>
    %106 = arith.select %103, %105, %58 : vector<8x128xi1>, vector<8x128xf32>
    %107 = vector.extract_strided_slice %78 {offsets = [0, 0], sizes = [8, 128], strides = [1, 1]} : vector<8x384xf32> to vector<8x128xf32>
    %108 = arith.addf %5, %107 : vector<8x128xf32>
    %109 = arith.negf %108 : vector<8x128xf32>
    %110 = math.exp %109 : vector<8x128xf32>
    %cst_25 = arith.constant 1.000000e+00 : f32
    %111 = vector.broadcast %cst_25 : f32 to vector<8x128xf32>
    %112 = arith.addf %111, %110 : vector<8x128xf32>
    %113 = arith.divf %111, %112 : vector<8x128xf32>
    %114 = vector.extract_strided_slice %113 {offsets = [0, 0], sizes = [8, 32], strides = [1, 1]} : vector<8x128xf32> to vector<8x32xf32>
    %115 = vector.extract_strided_slice %113 {offsets = [0, 32], sizes = [8, 32], strides = [1, 1]} : vector<8x128xf32> to vector<8x32xf32>
    %116 = vector.extract_strided_slice %113 {offsets = [0, 96], sizes = [8, 32], strides = [1, 1]} : vector<8x128xf32> to vector<8x32xf32>
    %117 = vector.extract_strided_slice %108 {offsets = [0, 64], sizes = [8, 32], strides = [1, 1]} : vector<8x128xf32> to vector<8x32xf32>
    %118 = math.tanh %117 : vector<8x32xf32>
    %119 = arith.mulf %115, %73 : vector<8x32xf32>
    %120 = arith.mulf %114, %118 : vector<8x32xf32>
    %121 = arith.addf %119, %120 : vector<8x32xf32>
    %122 = math.tanh %121 : vector<8x32xf32>
    %123 = arith.mulf %116, %122 : vector<8x32xf32>
    %124 = tpu.concatenate %123, %97 in 1 : vector<8x32xf32>, vector<8x64xf32> -> vector<8x96xf32>
    %c0_26 = arith.constant 0 : index
    %c0_27 = arith.constant 0 : index
    %125 = vector.load %arg4[%c0_26, %c0_27] : memref<96x384xf32, #tpu.memory_space<vmem>>, vector<96x384xf32>
    %cst_28 = arith.constant dense<0.000000e+00> : vector<8x384xf32>
    %126 = tpu.matmul %124, %125, %cst_28 {dimension_numbers = #tpu.dot_dimension_numbers<[1], [0], [0], [1], [0, 0, 1, 1], [], []>} : vector<8x96xf32>, vector<96x384xf32>, vector<8x384xf32> -> vector<8x384xf32>
    %127 = vector.extract_strided_slice %126 {offsets = [0, 128], sizes = [8, 256], strides = [1, 1]} : vector<8x384xf32> to vector<8x256xf32>
    %128 = vector.broadcast %6 : vector<1x256xf32> to vector<8x256xf32>
    %129 = arith.addf %127, %128 : vector<8x256xf32>
    %130 = vector.extract_strided_slice %129 {offsets = [0, 0], sizes = [8, 192], strides = [1, 1]} : vector<8x256xf32> to vector<8x192xf32>
    %131 = arith.negf %130 : vector<8x192xf32>
    %132 = math.exp %131 : vector<8x192xf32>
    %cst_29 = arith.constant 1.000000e+00 : f32
    %133 = vector.broadcast %cst_29 : f32 to vector<8x192xf32>
    %134 = arith.addf %133, %132 : vector<8x192xf32>
    %135 = arith.divf %133, %134 : vector<8x192xf32>
    %136 = vector.extract_strided_slice %135 {offsets = [0, 0], sizes = [8, 64], strides = [1, 1]} : vector<8x192xf32> to vector<8x64xf32>
    %137 = vector.extract_strided_slice %135 {offsets = [0, 64], sizes = [8, 64], strides = [1, 1]} : vector<8x192xf32> to vector<8x64xf32>
    %138 = vector.extract_strided_slice %135 {offsets = [0, 128], sizes = [8, 64], strides = [1, 1]} : vector<8x192xf32> to vector<8x64xf32>
    %139 = vector.extract_strided_slice %129 {offsets = [0, 192], sizes = [8, 64], strides = [1, 1]} : vector<8x256xf32> to vector<8x64xf32>
    %140 = math.tanh %139 : vector<8x64xf32>
    %141 = arith.mulf %137, %95 : vector<8x64xf32>
    %142 = arith.mulf %136, %140 : vector<8x64xf32>
    %143 = arith.addf %141, %142 : vector<8x64xf32>
    %144 = math.tanh %143 : vector<8x64xf32>
    %145 = arith.mulf %138, %144 : vector<8x64xf32>
    %146 = vector.broadcast %7 : vector<1x64xf32> to vector<8x64xf32>
    %147 = arith.mulf %145, %146 : vector<8x64xf32>
    %cst_30 = arith.constant dense<0.000000e+00> : vector<8xf32>
    %148 = vector.multi_reduction <add>, %147, %cst_30 [1] : vector<8x64xf32> to vector<8xf32>
    %149 = vector.shape_cast %148 : vector<8xf32> to vector<8x1xf32>
    %c2_i32 = arith.constant 2 : i32
    %150 = vector.broadcast %c2_i32 : i32 to vector<8x128xi32>
    %151 = arith.cmpi eq, %26, %150 : vector<8x128xi32>
    %152 = vector.shape_cast %149 : vector<8x1xf32> to vector<8x1xf32>
    %153 = vector.broadcast %152 : vector<8x1xf32> to vector<8x128xf32>
    %154 = arith.select %151, %153, %106 : vector<8x128xi1>, vector<8x128xf32>
    %155 = vector.extract_strided_slice %126 {offsets = [0, 0], sizes = [8, 128], strides = [1, 1]} : vector<8x384xf32> to vector<8x128xf32>
    %156 = arith.addf %5, %155 : vector<8x128xf32>
    %157 = arith.negf %156 : vector<8x128xf32>
    %158 = math.exp %157 : vector<8x128xf32>
    %cst_31 = arith.constant 1.000000e+00 : f32
    %159 = vector.broadcast %cst_31 : f32 to vector<8x128xf32>
    %160 = arith.addf %159, %158 : vector<8x128xf32>
    %161 = arith.divf %159, %160 : vector<8x128xf32>
    %162 = vector.extract_strided_slice %161 {offsets = [0, 0], sizes = [8, 32], strides = [1, 1]} : vector<8x128xf32> to vector<8x32xf32>
    %163 = vector.extract_strided_slice %161 {offsets = [0, 32], sizes = [8, 32], strides = [1, 1]} : vector<8x128xf32> to vector<8x32xf32>
    %164 = vector.extract_strided_slice %161 {offsets = [0, 96], sizes = [8, 32], strides = [1, 1]} : vector<8x128xf32> to vector<8x32xf32>
    %165 = vector.extract_strided_slice %156 {offsets = [0, 64], sizes = [8, 32], strides = [1, 1]} : vector<8x128xf32> to vector<8x32xf32>
    %166 = math.tanh %165 : vector<8x32xf32>
    %167 = arith.mulf %163, %121 : vector<8x32xf32>
    %168 = arith.mulf %162, %166 : vector<8x32xf32>
    %169 = arith.addf %167, %168 : vector<8x32xf32>
    %170 = math.tanh %169 : vector<8x32xf32>
    %171 = arith.mulf %164, %170 : vector<8x32xf32>
    %172 = tpu.concatenate %171, %145 in 1 : vector<8x32xf32>, vector<8x64xf32> -> vector<8x96xf32>
    %c0_32 = arith.constant 0 : index
    %c0_33 = arith.constant 0 : index
    %173 = vector.load %arg4[%c0_32, %c0_33] : memref<96x384xf32, #tpu.memory_space<vmem>>, vector<96x384xf32>
    %cst_34 = arith.constant dense<0.000000e+00> : vector<8x384xf32>
    %174 = tpu.matmul %172, %173, %cst_34 {dimension_numbers = #tpu.dot_dimension_numbers<[1], [0], [0], [1], [0, 0, 1, 1], [], []>} : vector<8x96xf32>, vector<96x384xf32>, vector<8x384xf32> -> vector<8x384xf32>
    %175 = vector.extract_strided_slice %174 {offsets = [0, 128], sizes = [8, 256], strides = [1, 1]} : vector<8x384xf32> to vector<8x256xf32>
    %176 = vector.broadcast %6 : vector<1x256xf32> to vector<8x256xf32>
    %177 = arith.addf %175, %176 : vector<8x256xf32>
    %178 = vector.extract_strided_slice %177 {offsets = [0, 0], sizes = [8, 192], strides = [1, 1]} : vector<8x256xf32> to vector<8x192xf32>
    %179 = arith.negf %178 : vector<8x192xf32>
    %180 = math.exp %179 : vector<8x192xf32>
    %cst_35 = arith.constant 1.000000e+00 : f32
    %181 = vector.broadcast %cst_35 : f32 to vector<8x192xf32>
    %182 = arith.addf %181, %180 : vector<8x192xf32>
    %183 = arith.divf %181, %182 : vector<8x192xf32>
    %184 = vector.extract_strided_slice %183 {offsets = [0, 0], sizes = [8, 64], strides = [1, 1]} : vector<8x192xf32> to vector<8x64xf32>
    %185 = vector.extract_strided_slice %183 {offsets = [0, 64], sizes = [8, 64], strides = [1, 1]} : vector<8x192xf32> to vector<8x64xf32>
    %186 = vector.extract_strided_slice %183 {offsets = [0, 128], sizes = [8, 64], strides = [1, 1]} : vector<8x192xf32> to vector<8x64xf32>
    %187 = vector.extract_strided_slice %177 {offsets = [0, 192], sizes = [8, 64], strides = [1, 1]} : vector<8x256xf32> to vector<8x64xf32>
    %188 = math.tanh %187 : vector<8x64xf32>
    %189 = arith.mulf %185, %143 : vector<8x64xf32>
    %190 = arith.mulf %184, %188 : vector<8x64xf32>
    %191 = arith.addf %189, %190 : vector<8x64xf32>
    %192 = math.tanh %191 : vector<8x64xf32>
    %193 = arith.mulf %186, %192 : vector<8x64xf32>
    %194 = vector.broadcast %7 : vector<1x64xf32> to vector<8x64xf32>
    %195 = arith.mulf %193, %194 : vector<8x64xf32>
    %cst_36 = arith.constant dense<0.000000e+00> : vector<8xf32>
    %196 = vector.multi_reduction <add>, %195, %cst_36 [1] : vector<8x64xf32> to vector<8xf32>
    %197 = vector.shape_cast %196 : vector<8xf32> to vector<8x1xf32>
    %c3_i32 = arith.constant 3 : i32
    %198 = vector.broadcast %c3_i32 : i32 to vector<8x128xi32>
    %199 = arith.cmpi eq, %26, %198 : vector<8x128xi32>
    %200 = vector.shape_cast %197 : vector<8x1xf32> to vector<8x1xf32>
    %201 = vector.broadcast %200 : vector<8x1xf32> to vector<8x128xf32>
    %202 = arith.select %199, %201, %154 : vector<8x128xi1>, vector<8x128xf32>
    %203 = vector.extract_strided_slice %174 {offsets = [0, 0], sizes = [8, 128], strides = [1, 1]} : vector<8x384xf32> to vector<8x128xf32>
    %204 = arith.addf %5, %203 : vector<8x128xf32>
    %205 = arith.negf %204 : vector<8x128xf32>
    %206 = math.exp %205 : vector<8x128xf32>
    %cst_37 = arith.constant 1.000000e+00 : f32
    %207 = vector.broadcast %cst_37 : f32 to vector<8x128xf32>
    %208 = arith.addf %207, %206 : vector<8x128xf32>
    %209 = arith.divf %207, %208 : vector<8x128xf32>
    %210 = vector.extract_strided_slice %209 {offsets = [0, 0], sizes = [8, 32], strides = [1, 1]} : vector<8x128xf32> to vector<8x32xf32>
    %211 = vector.extract_strided_slice %209 {offsets = [0, 32], sizes = [8, 32], strides = [1, 1]} : vector<8x128xf32> to vector<8x32xf32>
    %212 = vector.extract_strided_slice %209 {offsets = [0, 96], sizes = [8, 32], strides = [1, 1]} : vector<8x128xf32> to vector<8x32xf32>
    %213 = vector.extract_strided_slice %204 {offsets = [0, 64], sizes = [8, 32], strides = [1, 1]} : vector<8x128xf32> to vector<8x32xf32>
    %214 = math.tanh %213 : vector<8x32xf32>
    %215 = arith.mulf %211, %169 : vector<8x32xf32>
    %216 = arith.mulf %210, %214 : vector<8x32xf32>
    %217 = arith.addf %215, %216 : vector<8x32xf32>
    %218 = math.tanh %217 : vector<8x32xf32>
    %219 = arith.mulf %212, %218 : vector<8x32xf32>
    %220 = tpu.concatenate %219, %193 in 1 : vector<8x32xf32>, vector<8x64xf32> -> vector<8x96xf32>
    %c0_38 = arith.constant 0 : index
    %c0_39 = arith.constant 0 : index
    %221 = vector.load %arg4[%c0_38, %c0_39] : memref<96x384xf32, #tpu.memory_space<vmem>>, vector<96x384xf32>
    %cst_40 = arith.constant dense<0.000000e+00> : vector<8x384xf32>
    %222 = tpu.matmul %220, %221, %cst_40 {dimension_numbers = #tpu.dot_dimension_numbers<[1], [0], [0], [1], [0, 0, 1, 1], [], []>} : vector<8x96xf32>, vector<96x384xf32>, vector<8x384xf32> -> vector<8x384xf32>
    %223 = vector.extract_strided_slice %222 {offsets = [0, 128], sizes = [8, 256], strides = [1, 1]} : vector<8x384xf32> to vector<8x256xf32>
    %224 = vector.broadcast %6 : vector<1x256xf32> to vector<8x256xf32>
    %225 = arith.addf %223, %224 : vector<8x256xf32>
    %226 = vector.extract_strided_slice %225 {offsets = [0, 0], sizes = [8, 192], strides = [1, 1]} : vector<8x256xf32> to vector<8x192xf32>
    %227 = arith.negf %226 : vector<8x192xf32>
    %228 = math.exp %227 : vector<8x192xf32>
    %cst_41 = arith.constant 1.000000e+00 : f32
    %229 = vector.broadcast %cst_41 : f32 to vector<8x192xf32>
    %230 = arith.addf %229, %228 : vector<8x192xf32>
    %231 = arith.divf %229, %230 : vector<8x192xf32>
    %232 = vector.extract_strided_slice %231 {offsets = [0, 0], sizes = [8, 64], strides = [1, 1]} : vector<8x192xf32> to vector<8x64xf32>
    %233 = vector.extract_strided_slice %231 {offsets = [0, 64], sizes = [8, 64], strides = [1, 1]} : vector<8x192xf32> to vector<8x64xf32>
    %234 = vector.extract_strided_slice %231 {offsets = [0, 128], sizes = [8, 64], strides = [1, 1]} : vector<8x192xf32> to vector<8x64xf32>
    %235 = vector.extract_strided_slice %225 {offsets = [0, 192], sizes = [8, 64], strides = [1, 1]} : vector<8x256xf32> to vector<8x64xf32>
    %236 = math.tanh %235 : vector<8x64xf32>
    %237 = arith.mulf %233, %191 : vector<8x64xf32>
    %238 = arith.mulf %232, %236 : vector<8x64xf32>
    %239 = arith.addf %237, %238 : vector<8x64xf32>
    %240 = math.tanh %239 : vector<8x64xf32>
    %241 = arith.mulf %234, %240 : vector<8x64xf32>
    %242 = vector.broadcast %7 : vector<1x64xf32> to vector<8x64xf32>
    %243 = arith.mulf %241, %242 : vector<8x64xf32>
    %cst_42 = arith.constant dense<0.000000e+00> : vector<8xf32>
    %244 = vector.multi_reduction <add>, %243, %cst_42 [1] : vector<8x64xf32> to vector<8xf32>
    %245 = vector.shape_cast %244 : vector<8xf32> to vector<8x1xf32>
    %c4_i32 = arith.constant 4 : i32
    %246 = vector.broadcast %c4_i32 : i32 to vector<8x128xi32>
    %247 = arith.cmpi eq, %26, %246 : vector<8x128xi32>
    %248 = vector.shape_cast %245 : vector<8x1xf32> to vector<8x1xf32>
    %249 = vector.broadcast %248 : vector<8x1xf32> to vector<8x128xf32>
    %250 = arith.select %247, %249, %202 : vector<8x128xi1>, vector<8x128xf32>
    %251 = vector.extract_strided_slice %222 {offsets = [0, 0], sizes = [8, 128], strides = [1, 1]} : vector<8x384xf32> to vector<8x128xf32>
    %252 = arith.addf %5, %251 : vector<8x128xf32>
    %253 = arith.negf %252 : vector<8x128xf32>
    %254 = math.exp %253 : vector<8x128xf32>
    %cst_43 = arith.constant 1.000000e+00 : f32
    %255 = vector.broadcast %cst_43 : f32 to vector<8x128xf32>
    %256 = arith.addf %255, %254 : vector<8x128xf32>
    %257 = arith.divf %255, %256 : vector<8x128xf32>
    %258 = vector.extract_strided_slice %257 {offsets = [0, 0], sizes = [8, 32], strides = [1, 1]} : vector<8x128xf32> to vector<8x32xf32>
    %259 = vector.extract_strided_slice %257 {offsets = [0, 32], sizes = [8, 32], strides = [1, 1]} : vector<8x128xf32> to vector<8x32xf32>
    %260 = vector.extract_strided_slice %257 {offsets = [0, 96], sizes = [8, 32], strides = [1, 1]} : vector<8x128xf32> to vector<8x32xf32>
    %261 = vector.extract_strided_slice %252 {offsets = [0, 64], sizes = [8, 32], strides = [1, 1]} : vector<8x128xf32> to vector<8x32xf32>
    %262 = math.tanh %261 : vector<8x32xf32>
    %263 = arith.mulf %259, %217 : vector<8x32xf32>
    %264 = arith.mulf %258, %262 : vector<8x32xf32>
    %265 = arith.addf %263, %264 : vector<8x32xf32>
    %266 = math.tanh %265 : vector<8x32xf32>
    %267 = arith.mulf %260, %266 : vector<8x32xf32>
    %268 = tpu.concatenate %267, %241 in 1 : vector<8x32xf32>, vector<8x64xf32> -> vector<8x96xf32>
    %c0_44 = arith.constant 0 : index
    %c0_45 = arith.constant 0 : index
    %269 = vector.load %arg4[%c0_44, %c0_45] : memref<96x384xf32, #tpu.memory_space<vmem>>, vector<96x384xf32>
    %cst_46 = arith.constant dense<0.000000e+00> : vector<8x384xf32>
    %270 = tpu.matmul %268, %269, %cst_46 {dimension_numbers = #tpu.dot_dimension_numbers<[1], [0], [0], [1], [0, 0, 1, 1], [], []>} : vector<8x96xf32>, vector<96x384xf32>, vector<8x384xf32> -> vector<8x384xf32>
    %271 = vector.extract_strided_slice %270 {offsets = [0, 128], sizes = [8, 256], strides = [1, 1]} : vector<8x384xf32> to vector<8x256xf32>
    %272 = vector.broadcast %6 : vector<1x256xf32> to vector<8x256xf32>
    %273 = arith.addf %271, %272 : vector<8x256xf32>
    %274 = vector.extract_strided_slice %273 {offsets = [0, 0], sizes = [8, 192], strides = [1, 1]} : vector<8x256xf32> to vector<8x192xf32>
    %275 = arith.negf %274 : vector<8x192xf32>
    %276 = math.exp %275 : vector<8x192xf32>
    %cst_47 = arith.constant 1.000000e+00 : f32
    %277 = vector.broadcast %cst_47 : f32 to vector<8x192xf32>
    %278 = arith.addf %277, %276 : vector<8x192xf32>
    %279 = arith.divf %277, %278 : vector<8x192xf32>
    %280 = vector.extract_strided_slice %279 {offsets = [0, 0], sizes = [8, 64], strides = [1, 1]} : vector<8x192xf32> to vector<8x64xf32>
    %281 = vector.extract_strided_slice %279 {offsets = [0, 64], sizes = [8, 64], strides = [1, 1]} : vector<8x192xf32> to vector<8x64xf32>
    %282 = vector.extract_strided_slice %279 {offsets = [0, 128], sizes = [8, 64], strides = [1, 1]} : vector<8x192xf32> to vector<8x64xf32>
    %283 = vector.extract_strided_slice %273 {offsets = [0, 192], sizes = [8, 64], strides = [1, 1]} : vector<8x256xf32> to vector<8x64xf32>
    %284 = math.tanh %283 : vector<8x64xf32>
    %285 = arith.mulf %281, %239 : vector<8x64xf32>
    %286 = arith.mulf %280, %284 : vector<8x64xf32>
    %287 = arith.addf %285, %286 : vector<8x64xf32>
    %288 = math.tanh %287 : vector<8x64xf32>
    %289 = arith.mulf %282, %288 : vector<8x64xf32>
    %290 = vector.broadcast %7 : vector<1x64xf32> to vector<8x64xf32>
    %291 = arith.mulf %289, %290 : vector<8x64xf32>
    %cst_48 = arith.constant dense<0.000000e+00> : vector<8xf32>
    %292 = vector.multi_reduction <add>, %291, %cst_48 [1] : vector<8x64xf32> to vector<8xf32>
    %293 = vector.shape_cast %292 : vector<8xf32> to vector<8x1xf32>
    %c5_i32 = arith.constant 5 : i32
    %294 = vector.broadcast %c5_i32 : i32 to vector<8x128xi32>
    %295 = arith.cmpi eq, %26, %294 : vector<8x128xi32>
    %296 = vector.shape_cast %293 : vector<8x1xf32> to vector<8x1xf32>
    %297 = vector.broadcast %296 : vector<8x1xf32> to vector<8x128xf32>
    %298 = arith.select %295, %297, %250 : vector<8x128xi1>, vector<8x128xf32>
    %299 = vector.extract_strided_slice %270 {offsets = [0, 0], sizes = [8, 128], strides = [1, 1]} : vector<8x384xf32> to vector<8x128xf32>
    %300 = arith.addf %5, %299 : vector<8x128xf32>
    %301 = arith.negf %300 : vector<8x128xf32>
    %302 = math.exp %301 : vector<8x128xf32>
    %cst_49 = arith.constant 1.000000e+00 : f32
    %303 = vector.broadcast %cst_49 : f32 to vector<8x128xf32>
    %304 = arith.addf %303, %302 : vector<8x128xf32>
    %305 = arith.divf %303, %304 : vector<8x128xf32>
    %306 = vector.extract_strided_slice %305 {offsets = [0, 0], sizes = [8, 32], strides = [1, 1]} : vector<8x128xf32> to vector<8x32xf32>
    %307 = vector.extract_strided_slice %305 {offsets = [0, 32], sizes = [8, 32], strides = [1, 1]} : vector<8x128xf32> to vector<8x32xf32>
    %308 = vector.extract_strided_slice %305 {offsets = [0, 96], sizes = [8, 32], strides = [1, 1]} : vector<8x128xf32> to vector<8x32xf32>
    %309 = vector.extract_strided_slice %300 {offsets = [0, 64], sizes = [8, 32], strides = [1, 1]} : vector<8x128xf32> to vector<8x32xf32>
    %310 = math.tanh %309 : vector<8x32xf32>
    %311 = arith.mulf %307, %265 : vector<8x32xf32>
    %312 = arith.mulf %306, %310 : vector<8x32xf32>
    %313 = arith.addf %311, %312 : vector<8x32xf32>
    %314 = math.tanh %313 : vector<8x32xf32>
    %315 = arith.mulf %308, %314 : vector<8x32xf32>
    %316 = tpu.concatenate %315, %289 in 1 : vector<8x32xf32>, vector<8x64xf32> -> vector<8x96xf32>
    %c0_50 = arith.constant 0 : index
    %c0_51 = arith.constant 0 : index
    %317 = vector.load %arg4[%c0_50, %c0_51] : memref<96x384xf32, #tpu.memory_space<vmem>>, vector<96x384xf32>
    %cst_52 = arith.constant dense<0.000000e+00> : vector<8x384xf32>
    %318 = tpu.matmul %316, %317, %cst_52 {dimension_numbers = #tpu.dot_dimension_numbers<[1], [0], [0], [1], [0, 0, 1, 1], [], []>} : vector<8x96xf32>, vector<96x384xf32>, vector<8x384xf32> -> vector<8x384xf32>
    %319 = vector.extract_strided_slice %318 {offsets = [0, 128], sizes = [8, 256], strides = [1, 1]} : vector<8x384xf32> to vector<8x256xf32>
    %320 = vector.broadcast %6 : vector<1x256xf32> to vector<8x256xf32>
    %321 = arith.addf %319, %320 : vector<8x256xf32>
    %322 = vector.extract_strided_slice %321 {offsets = [0, 0], sizes = [8, 192], strides = [1, 1]} : vector<8x256xf32> to vector<8x192xf32>
    %323 = arith.negf %322 : vector<8x192xf32>
    %324 = math.exp %323 : vector<8x192xf32>
    %cst_53 = arith.constant 1.000000e+00 : f32
    %325 = vector.broadcast %cst_53 : f32 to vector<8x192xf32>
    %326 = arith.addf %325, %324 : vector<8x192xf32>
    %327 = arith.divf %325, %326 : vector<8x192xf32>
    %328 = vector.extract_strided_slice %327 {offsets = [0, 0], sizes = [8, 64], strides = [1, 1]} : vector<8x192xf32> to vector<8x64xf32>
    %329 = vector.extract_strided_slice %327 {offsets = [0, 64], sizes = [8, 64], strides = [1, 1]} : vector<8x192xf32> to vector<8x64xf32>
    %330 = vector.extract_strided_slice %327 {offsets = [0, 128], sizes = [8, 64], strides = [1, 1]} : vector<8x192xf32> to vector<8x64xf32>
    %331 = vector.extract_strided_slice %321 {offsets = [0, 192], sizes = [8, 64], strides = [1, 1]} : vector<8x256xf32> to vector<8x64xf32>
    %332 = math.tanh %331 : vector<8x64xf32>
    %333 = arith.mulf %329, %287 : vector<8x64xf32>
    %334 = arith.mulf %328, %332 : vector<8x64xf32>
    %335 = arith.addf %333, %334 : vector<8x64xf32>
    %336 = math.tanh %335 : vector<8x64xf32>
    %337 = arith.mulf %330, %336 : vector<8x64xf32>
    %338 = vector.broadcast %7 : vector<1x64xf32> to vector<8x64xf32>
    %339 = arith.mulf %337, %338 : vector<8x64xf32>
    %cst_54 = arith.constant dense<0.000000e+00> : vector<8xf32>
    %340 = vector.multi_reduction <add>, %339, %cst_54 [1] : vector<8x64xf32> to vector<8xf32>
    %341 = vector.shape_cast %340 : vector<8xf32> to vector<8x1xf32>
    %c6_i32 = arith.constant 6 : i32
    %342 = vector.broadcast %c6_i32 : i32 to vector<8x128xi32>
    %343 = arith.cmpi eq, %26, %342 : vector<8x128xi32>
    %344 = vector.shape_cast %341 : vector<8x1xf32> to vector<8x1xf32>
    %345 = vector.broadcast %344 : vector<8x1xf32> to vector<8x128xf32>
    %346 = arith.select %343, %345, %298 : vector<8x128xi1>, vector<8x128xf32>
    %347 = vector.extract_strided_slice %318 {offsets = [0, 0], sizes = [8, 128], strides = [1, 1]} : vector<8x384xf32> to vector<8x128xf32>
    %348 = arith.addf %5, %347 : vector<8x128xf32>
    %349 = arith.negf %348 : vector<8x128xf32>
    %350 = math.exp %349 : vector<8x128xf32>
    %cst_55 = arith.constant 1.000000e+00 : f32
    %351 = vector.broadcast %cst_55 : f32 to vector<8x128xf32>
    %352 = arith.addf %351, %350 : vector<8x128xf32>
    %353 = arith.divf %351, %352 : vector<8x128xf32>
    %354 = vector.extract_strided_slice %353 {offsets = [0, 0], sizes = [8, 32], strides = [1, 1]} : vector<8x128xf32> to vector<8x32xf32>
    %355 = vector.extract_strided_slice %353 {offsets = [0, 32], sizes = [8, 32], strides = [1, 1]} : vector<8x128xf32> to vector<8x32xf32>
    %356 = vector.extract_strided_slice %353 {offsets = [0, 96], sizes = [8, 32], strides = [1, 1]} : vector<8x128xf32> to vector<8x32xf32>
    %357 = vector.extract_strided_slice %348 {offsets = [0, 64], sizes = [8, 32], strides = [1, 1]} : vector<8x128xf32> to vector<8x32xf32>
    %358 = math.tanh %357 : vector<8x32xf32>
    %359 = arith.mulf %355, %313 : vector<8x32xf32>
    %360 = arith.mulf %354, %358 : vector<8x32xf32>
    %361 = arith.addf %359, %360 : vector<8x32xf32>
    %362 = math.tanh %361 : vector<8x32xf32>
    %363 = arith.mulf %356, %362 : vector<8x32xf32>
    %364 = tpu.concatenate %363, %337 in 1 : vector<8x32xf32>, vector<8x64xf32> -> vector<8x96xf32>
    %c0_56 = arith.constant 0 : index
    %c0_57 = arith.constant 0 : index
    %365 = vector.load %arg4[%c0_56, %c0_57] : memref<96x384xf32, #tpu.memory_space<vmem>>, vector<96x384xf32>
    %cst_58 = arith.constant dense<0.000000e+00> : vector<8x384xf32>
    %366 = tpu.matmul %364, %365, %cst_58 {dimension_numbers = #tpu.dot_dimension_numbers<[1], [0], [0], [1], [0, 0, 1, 1], [], []>} : vector<8x96xf32>, vector<96x384xf32>, vector<8x384xf32> -> vector<8x384xf32>
    %367 = vector.extract_strided_slice %366 {offsets = [0, 128], sizes = [8, 256], strides = [1, 1]} : vector<8x384xf32> to vector<8x256xf32>
    %368 = vector.broadcast %6 : vector<1x256xf32> to vector<8x256xf32>
    %369 = arith.addf %367, %368 : vector<8x256xf32>
    %370 = vector.extract_strided_slice %369 {offsets = [0, 0], sizes = [8, 192], strides = [1, 1]} : vector<8x256xf32> to vector<8x192xf32>
    %371 = arith.negf %370 : vector<8x192xf32>
    %372 = math.exp %371 : vector<8x192xf32>
    %cst_59 = arith.constant 1.000000e+00 : f32
    %373 = vector.broadcast %cst_59 : f32 to vector<8x192xf32>
    %374 = arith.addf %373, %372 : vector<8x192xf32>
    %375 = arith.divf %373, %374 : vector<8x192xf32>
    %376 = vector.extract_strided_slice %375 {offsets = [0, 0], sizes = [8, 64], strides = [1, 1]} : vector<8x192xf32> to vector<8x64xf32>
    %377 = vector.extract_strided_slice %375 {offsets = [0, 64], sizes = [8, 64], strides = [1, 1]} : vector<8x192xf32> to vector<8x64xf32>
    %378 = vector.extract_strided_slice %375 {offsets = [0, 128], sizes = [8, 64], strides = [1, 1]} : vector<8x192xf32> to vector<8x64xf32>
    %379 = vector.extract_strided_slice %369 {offsets = [0, 192], sizes = [8, 64], strides = [1, 1]} : vector<8x256xf32> to vector<8x64xf32>
    %380 = math.tanh %379 : vector<8x64xf32>
    %381 = arith.mulf %377, %335 : vector<8x64xf32>
    %382 = arith.mulf %376, %380 : vector<8x64xf32>
    %383 = arith.addf %381, %382 : vector<8x64xf32>
    %384 = math.tanh %383 : vector<8x64xf32>
    %385 = arith.mulf %378, %384 : vector<8x64xf32>
    %386 = vector.broadcast %7 : vector<1x64xf32> to vector<8x64xf32>
    %387 = arith.mulf %385, %386 : vector<8x64xf32>
    %cst_60 = arith.constant dense<0.000000e+00> : vector<8xf32>
    %388 = vector.multi_reduction <add>, %387, %cst_60 [1] : vector<8x64xf32> to vector<8xf32>
    %389 = vector.shape_cast %388 : vector<8xf32> to vector<8x1xf32>
    %c7_i32 = arith.constant 7 : i32
    %390 = vector.broadcast %c7_i32 : i32 to vector<8x128xi32>
    %391 = arith.cmpi eq, %26, %390 : vector<8x128xi32>
    %392 = vector.shape_cast %389 : vector<8x1xf32> to vector<8x1xf32>
    %393 = vector.broadcast %392 : vector<8x1xf32> to vector<8x128xf32>
    %394 = arith.select %391, %393, %346 : vector<8x128xi1>, vector<8x128xf32>
    %c0_61 = arith.constant 0 : index
    %c0_62 = arith.constant 0 : index
    %395 = vector.load %arg7[%c0_61, %c0_62] : memref<1x128xf32, #tpu.memory_space<vmem>>, vector<1x128xf32>
    %396 = vector.broadcast %395 : vector<1x128xf32> to vector<8x128xf32>
    %397 = arith.addf %394, %396 : vector<8x128xf32>
    %c0_63 = arith.constant 0 : index
    %c0_64 = arith.constant 0 : index
    %398 = vector.load %arg8[%c0_63, %c0_64] : memref<8x128xf32, #tpu.memory_space<vmem>>, vector<8x128xf32>
    tpu.vector_store %arg8[%c0_63, %c0_64], %397 {strides = array<i32>} : memref<8x128xf32, #tpu.memory_space<vmem>>, vector<8x128xf32>,
    return
  }
  func.func @transform_0(%arg0: i32) -> (i32, i32) {
    %c0_i32 = arith.constant 0 : i32
    %c0_i32_0 = arith.constant 0 : i32
    return %arg0, %c0_i32 : i32, i32
  }
  func.func @transform_1(%arg0: i32) -> (i32, i32) {
    %c0_i32 = arith.constant 0 : i32
    %c0_i32_0 = arith.constant 0 : i32
    %c0_i32_1 = arith.constant 0 : i32
    return %c0_i32, %c0_i32_0 : i32, i32
  }
  func.func @transform_2(%arg0: i32) -> (i32, i32) {
    %c0_i32 = arith.constant 0 : i32
    %c0_i32_0 = arith.constant 0 : i32
    %c0_i32_1 = arith.constant 0 : i32
    return %c0_i32, %c0_i32_0 : i32, i32
  }
  func.func @transform_3(%arg0: i32) -> (i32, i32) {
    %c0_i32 = arith.constant 0 : i32
    %c0_i32_0 = arith.constant 0 : i32
    %c0_i32_1 = arith.constant 0 : i32
    return %c0_i32, %c0_i32_0 : i32, i32
  }
  func.func @transform_4(%arg0: i32) -> (i32, i32) {
    %c0_i32 = arith.constant 0 : i32
    %c0_i32_0 = arith.constant 0 : i32
    %c0_i32_1 = arith.constant 0 : i32
    return %c0_i32, %c0_i32_0 : i32, i32
  }
  func.func @transform_5(%arg0: i32) -> (i32, i32) {
    %c0_i32 = arith.constant 0 : i32
    %c0_i32_0 = arith.constant 0 : i32
    %c0_i32_1 = arith.constant 0 : i32
    return %c0_i32, %c0_i32_0 : i32, i32
  }
  func.func @transform_6(%arg0: i32) -> (i32, i32) {
    %c0_i32 = arith.constant 0 : i32
    %c0_i32_0 = arith.constant 0 : i32
    %c0_i32_1 = arith.constant 0 : i32
    return %c0_i32, %c0_i32_0 : i32, i32
  }
  func.func @transform_7(%arg0: i32) -> (i32, i32) {
    %c0_i32 = arith.constant 0 : i32
    %c0_i32_0 = arith.constant 0 : i32
    return %arg0, %c0_i32 : i32, i32
  }
}

</mosaic_0001>

<llo_original>
// kernel: tpu_custom_call.1
$region0: #{tpu_custom_call.1}
  #allocation0 [shape = 'u32[]', space=smem, size = 0x4, offset = 0x4, fixed_abs, tag = 'smem constant byte address 0x4 - core index']
  #allocation1 [shape = 'u32[144,128]{1,0:T(1,128)}', space=vmem, size = 0x12000, scoped, tag = 'internal scratch']
  %s0 = inlined_call_operand.hbm [shape: f32[16,32], index: 0, kind: input, shape index: {}]
  %s1 = inlined_call_operand.hbm [shape: f32[32,128], index: 1, kind: input, shape index: {}]
  %s2 = inlined_call_operand.vmem [shape: f32[1,128], index: 2, kind: input, shape index: {}]
  %s3 = inlined_call_operand.hbm [shape: f32[96,384], index: 3, kind: input, shape index: {}]
  %s4 = inlined_call_operand.vmem [shape: f32[1,256], index: 4, kind: input, shape index: {}]
  %s5 = inlined_call_operand.vmem [shape: f32[1,64], index: 5, kind: input, shape index: {}]
  %s6 = inlined_call_operand.vmem [shape: f32[1,128], index: 6, kind: input, shape index: {}]
  %s7 = inlined_call_operand.hbm [shape: f32[16,128], index: 7, kind: output, shape index: {}]
  %s8 = sld [smem:[#allocation0]]
  $region73: #{tpu_custom_call.1} parent=0
    _
  %s10 = ssub.s32 1, %s8
  %s11 = scalar_select 0, %s10, %s8
  $region1: #{tpu_custom_call.1} parent=0
    #allocation2 [shape = 'u8[8192]{0}', space=vmem, size = 0x2000, scoped, tag = 'input window, operand 0']
    #allocation3 [shape = 's32[2]{0}', space=sflag, size = 0x8, scoped, tag = 'scoped memory for tpu_custom_call.1']
    #allocation4 [shape = 's32[2]{0}', space=sflag, size = 0x8, scoped, tag = 'scoped memory for tpu_custom_call.1']
    #allocation5 [shape = 'u8[16384]{0}', space=vmem, size = 0x4000, scoped, tag = 'input window, operand 1, single buffered']
    #allocation6 [shape = 's32[1]{0}', space=sflag, size = 0x4, scoped, tag = 'scoped memory for tpu_custom_call.1']
    #allocation7 [shape = 'u8[147456]{0}', space=vmem, size = 0x24000, scoped, tag = 'input window, operand 3, single buffered']
    #allocation8 [shape = 'u8[8192]{0}', space=vmem, size = 0x2000, scoped, tag = 'output window, operand 0']
    %12 = vsyncpa [#allocation3], 0
    %s13 = scalar_lea.sflag [#allocation3], 1
    %14 = vsyncpa %s13, 0
    %15 = vsyncpa [#allocation6], 0
    %16 = vsyncpa [#allocation4], 0
    %s17 = scalar_lea.sflag [#allocation4], 1
    %18 = vsyncpa %s17, 0
    loop: start=0, step=1, limit=4
    $region2: #{tpu_custom_call.1} parent=1 // loop_pre_header
      _
    $region3: #{tpu_custom_call.1} parent=1 // loop_header
      %s20 = sphi 0, %s24
      %p21 = scmp.ge.s32.totalorder %s20, 4
      %s30 = sphi 0, %s32
      %s33 = sphi 0, %s30
      %s34 = sphi 0, %s33
      %s50 = sphi 0, %s34
      %s54 = sphi 0, %s54
      %s56 = sphi 0, %s54
      %s57 = sphi 0, %s56
      %s71 = sphi 0, %s57
      %s75 = sphi 0, %s75
      %s77 = sphi 0, %s75
      %s78 = sphi 0, %s77
      %s92 = sphi 0, %s78
      %s96 = sphi 0, %s96
      %s98 = sphi 0, %s96
      %s99 = sphi 0, %s98
      %s113 = sphi 0, %s99
      %s117 = sphi 0, %s117
      %s119 = sphi 0, %s117
      %s120 = sphi 0, %s119
      %s134 = sphi 0, %s120
      %s138 = sphi 0, %s138
      %s140 = sphi 0, %s138
      %s141 = sphi 0, %s140
      %s155 = sphi 0, %s141
      %s159 = sphi 0, %s159
      %s161 = sphi 0, %s159
      %s162 = sphi 0, %s161
      %s176 = sphi 0, %s162
      %s182 = sphi 0, %s184
      %s185 = sphi 0, %s182
      %s186 = sphi 0, %s185
      %s202 = sphi 0, %s186
    $region4: #{tpu_custom_call.1} parent=1 // loop_header_branch
      %23 = sbr.rel (%p21) target = $region8
    $region5: #{tpu_custom_call.1} parent=1 // loop_body
      %s25 = ssub.s32 %s20, 1
      %s26 = ssub.s32 %s20, 2
      %s27 = sadd.s32 %s20, 1
      %s28 = ssub.s32 %s20, %s27
      %p29 = scmp.eq.s32.totalorder %s28, 0
      %s31 = sadd.s32 %s30, 1
      %s32 = scalar_select %p29, %s30, %s31
      %p35 = pneg %p29
      %p36 = scmp.eq.s32.totalorder %s20, 1
      %p37 = por %p35, %p36
      %p38 = scmp.ne.s32.totalorder %s30, %s33
      %p39 = scmp.eq.s32.totalorder %s20, 0
      %p40 = por %p38, %p39
      %p41 = scmp.ne.s32.totalorder %s30, %s33
      %p42 = scmp.eq.s32.totalorder %s25, 1
      %p43 = por %p41, %p42
      %p44 = scmp.ne.s32.totalorder %s33, %s34
      %p45 = scmp.eq.s32.totalorder %s25, 0
      %p46 = por %p44, %p45
      %p47 = scmp.ne.s32.totalorder %s33, %s34
      %p48 = scmp.eq.s32.totalorder %s26, 1
      %p49 = por %p47, %p48
      %p51 = scmp.ne.s32.totalorder %s34, %s50
      %p52 = scmp.eq.s32.totalorder %s26, 0
      %p53 = por %p51, %p52
      %s55 = sadd.s32 %s54, 1
      %p58 = scmp.eq.s32.totalorder %s20, 1
      %p59 = scmp.ne.s32.totalorder %s54, %s56
      %p60 = scmp.eq.s32.totalorder %s20, 0
      %p61 = por %p59, %p60
      %p62 = scmp.ne.s32.totalorder %s54, %s56
      %p63 = scmp.eq.s32.totalorder %s25, 1
      %p64 = por %p62, %p63
      %p65 = scmp.ne.s32.totalorder %s56, %s57
      %p66 = scmp.eq.s32.totalorder %s25, 0
      %p67 = por %p65, %p66
      %p68 = scmp.ne.s32.totalorder %s56, %s57
      %p69 = scmp.eq.s32.totalorder %s26, 1
      %p70 = por %p68, %p69
      %p72 = scmp.ne.s32.totalorder %s57, %s71
      %p73 = scmp.eq.s32.totalorder %s26, 0
      %p74 = por %p72, %p73
      %s76 = sadd.s32 %s75, 1
      %p79 = scmp.eq.s32.totalorder %s20, 1
      %p80 = scmp.ne.s32.totalorder %s75, %s77
      %p81 = scmp.eq.s32.totalorder %s20, 0
      %p82 = por %p80, %p81
      %p83 = scmp.ne.s32.totalorder %s75, %s77
      %p84 = scmp.eq.s32.totalorder %s25, 1
      %p85 = por %p83, %p84
      %p86 = scmp.ne.s32.totalorder %s77, %s78
      %p87 = scmp.eq.s32.totalorder %s25, 0
      %p88 = por %p86, %p87
      %p89 = scmp.ne.s32.totalorder %s77, %s78
      %p90 = scmp.eq.s32.totalorder %s26, 1
      %p91 = por %p89, %p90
      %p93 = scmp.ne.s32.totalorder %s78, %s92
      %p94 = scmp.eq.s32.totalorder %s26, 0
      %p95 = por %p93, %p94
      %s97 = sadd.s32 %s96, 1
      %p100 = scmp.eq.s32.totalorder %s20, 1
      %p101 = scmp.ne.s32.totalorder %s96, %s98
      %p102 = scmp.eq.s32.totalorder %s20, 0
      %p103 = por %p101, %p102
      %p104 = scmp.ne.s32.totalorder %s96, %s98
      %p105 = scmp.eq.s32.totalorder %s25, 1
      %p106 = por %p104, %p105
      %p107 = scmp.ne.s32.totalorder %s98, %s99
      %p108 = scmp.eq.s32.totalorder %s25, 0
      %p109 = por %p107, %p108
      %p110 = scmp.ne.s32.totalorder %s98, %s99
      %p111 = scmp.eq.s32.totalorder %s26, 1
      %p112 = por %p110, %p111
      %p114 = scmp.ne.s32.totalorder %s99, %s113
      %p115 = scmp.eq.s32.totalorder %s26, 0
      %p116 = por %p114, %p115
      %s118 = sadd.s32 %s117, 1
      %p121 = scmp.eq.s32.totalorder %s20, 1
      %p122 = scmp.ne.s32.totalorder %s117, %s119
      %p123 = scmp.eq.s32.totalorder %s20, 0
      %p124 = por %p122, %p123
      %p125 = scmp.ne.s32.totalorder %s117, %s119
      %p126 = scmp.eq.s32.totalorder %s25, 1
      %p127 = por %p125, %p126
      %p128 = scmp.ne.s32.totalorder %s119, %s120
      %p129 = scmp.eq.s32.totalorder %s25, 0
      %p130 = por %p128, %p129
      %p131 = scmp.ne.s32.totalorder %s119, %s120
      %p132 = scmp.eq.s32.totalorder %s26, 1
      %p133 = por %p131, %p132
      %p135 = scmp.ne.s32.totalorder %s120, %s134
      %p136 = scmp.eq.s32.totalorder %s26, 0
      %p137 = por %p135, %p136
      %s139 = sadd.s32 %s138, 1
      %p142 = scmp.eq.s32.totalorder %s20, 1
      %p143 = scmp.ne.s32.totalorder %s138, %s140
      %p144 = scmp.eq.s32.totalorder %s20, 0
      %p145 = por %p143, %p144
      %p146 = scmp.ne.s32.totalorder %s138, %s140
      %p147 = scmp.eq.s32.totalorder %s25, 1
      %p148 = por %p146, %p147
      %p149 = scmp.ne.s32.totalorder %s140, %s141
      %p150 = scmp.eq.s32.totalorder %s25, 0
      %p151 = por %p149, %p150
      %p152 = scmp.ne.s32.totalorder %s140, %s141
      %p153 = scmp.eq.s32.totalorder %s26, 1
      %p154 = por %p152, %p153
      %p156 = scmp.ne.s32.totalorder %s141, %s155
      %p157 = scmp.eq.s32.totalorder %s26, 0
      %p158 = por %p156, %p157
      %s160 = sadd.s32 %s159, 1
      %p163 = scmp.eq.s32.totalorder %s20, 1
      %p164 = scmp.ne.s32.totalorder %s159, %s161
      %p165 = scmp.eq.s32.totalorder %s20, 0
      %p166 = por %p164, %p165
      %p167 = scmp.ne.s32.totalorder %s159, %s161
      %p168 = scmp.eq.s32.totalorder %s25, 1
      %p169 = por %p167, %p168
      %p170 = scmp.ne.s32.totalorder %s161, %s162
      %p171 = scmp.eq.s32.totalorder %s25, 0
      %p172 = por %p170, %p171
      %p173 = scmp.ne.s32.totalorder %s161, %s162
      %p174 = scmp.eq.s32.totalorder %s26, 1
      %p175 = por %p173, %p174
      %p177 = scmp.ne.s32.totalorder %s162, %s176
      %p178 = scmp.eq.s32.totalorder %s26, 0
      %p179 = por %p177, %p178
      %s180 = ssub.s32 %s20, %s27
      %p181 = scmp.eq.s32.totalorder %s180, 0
      %s183 = sadd.s32 %s182, 1
      %s184 = scalar_select %p181, %s182, %s183
      %p187 = pneg %p181
      %p188 = scmp.eq.s32.totalorder %s20, 1
      %p189 = por %p187, %p188
      %p190 = scmp.ne.s32.totalorder %s182, %s185
      %p191 = scmp.eq.s32.totalorder %s20, 0
      %p192 = por %p190, %p191
      %p193 = scmp.ne.s32.totalorder %s182, %s185
      %p194 = scmp.eq.s32.totalorder %s25, 1
      %p195 = por %p193, %p194
      %p196 = scmp.ne.s32.totalorder %s185, %s186
      %p197 = scmp.eq.s32.totalorder %s25, 0
      %p198 = por %p196, %p197
      %p199 = scmp.ne.s32.totalorder %s185, %s186
      %p200 = scmp.eq.s32.totalorder %s26, 1
      %p201 = por %p199, %p200
      %p203 = scmp.ne.s32.totalorder %s186, %s202
      %p204 = scmp.eq.s32.totalorder %s26, 0
      %p205 = por %p203, %p204
      %p206 = scmp.le.s32.totalorder 1, %s20
      %p207 = scmp.lt.s32.totalorder %s20, 3
      %p208 = pnand %p206, %p207
      %p209 = pneg %p208
      // Predicated region
      $region9: #{tpu_custom_call.1} parent=5 // pred_check
        _
      $region10: #{tpu_custom_call.1} parent=5 // pred_check_branch
        %211 = sbr.rel (%p208) target = $region12
      $region11: #{tpu_custom_call.1} parent=5 // pred_region
        %s212 = ssub.s32 %s20, 1
        // Predicated region
        $region13: #{tpu_custom_call.1} parent=11 // pred_check
          %p213 = pneg %p67
        $region14: #{tpu_custom_call.1} parent=11 // pred_check_branch
          %215 = sbr.rel (%p213) target = $region16
        $region15: #{tpu_custom_call.1} parent=11 // pred_region
          %s217 = ssub.s32 512, 512
          %218 = vsyncadd [#allocation6], %s217
          %s219 = sshll.u32 [#allocation5], 4
          %s220 = int_to_ptr.vmem [resolvable:$true] %s219
          %225 = dma.hbm_to_vmem [thread:$0]  %s1, 512, %s220, [#allocation6], 128, 128, 8
        $region16: #{tpu_custom_call.1} parent=11 // pred_fallthru
          _
        // Predicated region
        $region17: #{tpu_custom_call.1} parent=11 // pred_check
          %p226 = pneg %p88
        $region18: #{tpu_custom_call.1} parent=11 // pred_check_branch
          %228 = sbr.rel (%p226) target = $region20
        $region19: #{tpu_custom_call.1} parent=11 // pred_region
          _
        $region20: #{tpu_custom_call.1} parent=11 // pred_fallthru
          _
        // Predicated region
        $region21: #{tpu_custom_call.1} parent=11 // pred_check
          %p229 = pneg %p109
        $region22: #{tpu_custom_call.1} parent=11 // pred_check_branch
          %231 = sbr.rel (%p229) target = $region24
        $region23: #{tpu_custom_call.1} parent=11 // pred_region
          %s233 = ssub.s32 4608, 4608
          %234 = vsyncadd [#allocation6], %s233
          %s235 = sshll.u32 [#allocation7], 4
          %s236 = int_to_ptr.vmem [resolvable:$true] %s235
          %241 = dma.hbm_to_vmem [thread:$0]  %s3, 4608, %s236, [#allocation6], 384, 384, 24
        $region24: #{tpu_custom_call.1} parent=11 // pred_fallthru
          _
        // Predicated region
        $region25: #{tpu_custom_call.1} parent=11 // pred_check
          %p242 = pneg %p130
        $region26: #{tpu_custom_call.1} parent=11 // pred_check_branch
          %244 = sbr.rel (%p242) target = $region28
        $region27: #{tpu_custom_call.1} parent=11 // pred_region
          _
        $region28: #{tpu_custom_call.1} parent=11 // pred_fallthru
          _
        // Predicated region
        $region29: #{tpu_custom_call.1} parent=11 // pred_check
          %p245 = pneg %p151
        $region30: #{tpu_custom_call.1} parent=11 // pred_check_branch
          %247 = sbr.rel (%p245) target = $region32
        $region31: #{tpu_custom_call.1} parent=11 // pred_region
          _
        $region32: #{tpu_custom_call.1} parent=11 // pred_fallthru
          _
        // Predicated region
        $region33: #{tpu_custom_call.1} parent=11 // pred_check
          %p248 = pneg %p172
        $region34: #{tpu_custom_call.1} parent=11 // pred_check_branch
          %250 = sbr.rel (%p248) target = $region36
        $region35: #{tpu_custom_call.1} parent=11 // pred_region
          _
        $region36: #{tpu_custom_call.1} parent=11 // pred_fallthru
          _
      $region12: #{tpu_custom_call.1} parent=5 // pred_fallthru
        _
      %p251 = scmp.lt.s32.totalorder %s20, 2
      // Predicated region
      $region37: #{tpu_custom_call.1} parent=5 // pred_check
        %p252 = pneg %p251
      $region38: #{tpu_custom_call.1} parent=5 // pred_check_branch
        %254 = sbr.rel (%p252) target = $region40
      $region39: #{tpu_custom_call.1} parent=5 // pred_region
        // Predicated region
        $region41: #{tpu_custom_call.1} parent=39 // pred_check
          %p255 = pneg %p40
        $region42: #{tpu_custom_call.1} parent=39 // pred_check_branch
          %257 = sbr.rel (%p255) target = $region44
        $region43: #{tpu_custom_call.1} parent=39 // pred_region
          %s258 = sand.u32 %s30, 1
          %s259 = scalar_lea.sflag [#allocation3], %s258
          %s260 = sand.u32 %s30, 1
          %s261 = smul.addr %s260, 8
          %s262 = scalar_lea.vmem [#allocation2], %s261
          %s264 = ssub.s32 128, 128
          %265 = vsyncadd %s259, %s264
          %s266 = smul.addr %s20, 128
          %s267 = scalar_lea.hbm %s0, %s266
          %s269 = sshll.u32 %s262, 4
          %s270 = int_to_ptr.vmem [resolvable:$true] %s269
          %272 = dma.hbm_to_vmem [thread:$0]  %s267, 128, %s270, %s259
        $region44: #{tpu_custom_call.1} parent=39 // pred_fallthru
          _
      $region40: #{tpu_custom_call.1} parent=5 // pred_fallthru
        _
      %p273 = scmp.le.s32.totalorder 1, %s20
      %p274 = scmp.lt.s32.totalorder %s20, 3
      %p275 = pnand %p273, %p274
      %p276 = pneg %p275
      // Predicated region
      $region45: #{tpu_custom_call.1} parent=5 // pred_check
        _
      $region46: #{tpu_custom_call.1} parent=5 // pred_check_branch
        %278 = sbr.rel (%p275) target = $region48
      $region47: #{tpu_custom_call.1} parent=5 // pred_region
        %s279 = ssub.s32 %s20, 1
        %s280 = sand.u32 %s33, 1
        %s281 = scalar_lea.sflag [#allocation3], %s280
        %s282 = sand.u32 %s33, 1
        %s283 = smul.addr %s282, 8
        %s284 = scalar_lea.vmem [#allocation2], %s283
        // Predicated region
        $region49: #{tpu_custom_call.1} parent=47 // pred_check
          %p285 = pneg %p46
        $region50: #{tpu_custom_call.1} parent=47 // pred_check_branch
          %287 = sbr.rel (%p285) target = $region52
        $region51: #{tpu_custom_call.1} parent=47 // pred_region
          %288 = dma.done %s281, 128
        $region52: #{tpu_custom_call.1} parent=47 // pred_fallthru
          _
        // Predicated region
        $region53: #{tpu_custom_call.1} parent=47 // pred_check
          %p289 = pneg %p67
        $region54: #{tpu_custom_call.1} parent=47 // pred_check_branch
          %291 = sbr.rel (%p289) target = $region56
        $region55: #{tpu_custom_call.1} parent=47 // pred_region
          %292 = dma.done [#allocation6], 512
        $region56: #{tpu_custom_call.1} parent=47 // pred_fallthru
          _
        // Predicated region
        $region57: #{tpu_custom_call.1} parent=47 // pred_check
          %p293 = pneg %p109
        $region58: #{tpu_custom_call.1} parent=47 // pred_check_branch
          %295 = sbr.rel (%p293) target = $region60
        $region59: #{tpu_custom_call.1} parent=47 // pred_region
          %296 = dma.done [#allocation6], 4608
        $region60: #{tpu_custom_call.1} parent=47 // pred_fallthru
          _
        %s297 = sand.u32 %s33, 1
        %s298 = scalar_lea.sflag [#allocation3], %s297
        %s299 = sand.u32 %s33, 1
        %s300 = smul.addr %s299, 8
        %s301 = scalar_lea.vmem [#allocation2], %s300
        %p302 = pneg %p46
        %p303 = pneg %p43
        %p304 = pneg %p67
        %p305 = pneg %p64
        %p306 = pneg %p88
        %p307 = pneg %p85
        %p308 = pneg %p109
        %p309 = pneg %p106
        %p310 = pneg %p130
        %p311 = pneg %p127
        %p312 = pneg %p151
        %p313 = pneg %p148
        %p314 = pneg %p172
        %p315 = pneg %p169
        %p316 = pneg %p198
        %p317 = pneg %p195
        %s318 = sand.u32 %s185, 1
        %s319 = scalar_lea.sflag [#allocation4], %s318
        %s320 = sand.u32 %s185, 1
        %s321 = smul.addr %s320, 8
        %s322 = scalar_lea.vmem [#allocation8], %s321
        %v323 = vld [vmem:[%s284] sm:$0xff]
        %v324 = vld [vmem:[#allocation5] sm:$0xff]
        %v325 = vld [vmem:[#allocation5 + $0x8] sm:$0xff]
        %v326 = vld [vmem:[#allocation5 + $0x10] sm:$0xff]
        %v327 = vld [vmem:[#allocation5 + $0x18] sm:$0xff]
        %v328 = vld [vmem:[%s2] sm:$0x1]
        %v330 = vlaneseq
        %v331 = vshrl.u32 %v330, 7
        %v332 = vsub.s32 0, %v331
        %v333 = vrot.slane %v328, %v332
        %vm335 = vcmask 261120
        %v337 = vsel %vm335, %v323, 0
        %339 = vmatprep.subr.mxu0 0.0
        %340 = vmatpush1.msra.mxu0 %v324
        %341 = vmatprep.subr.mxu0 0.0
        %342 = vmatpush1.msra.mxu0 %v325
        %343 = vmatprep.subr.mxu0 0.0
        %344 = vmatpush1.msra.mxu0 %v326
        %345 = vmatprep.subr.mxu0 0.0
        %346 = vmatpush1.msra.mxu0 %v327
        %347 = vmatprep.subr.mxu0 0.0
        %348 = vmatpush1.msra.mxu0 0.0
        %349 = vmatprep.subr.mxu0 0.0
        %350 = vmatpush1.msra.mxu0 0.0
        %351 = vmatprep.subr.mxu0 0.0
        %352 = vmatpush1.msra.mxu0 0.0
        %353 = vmatprep.subr.mxu0 0.0
        %354 = vmatpush1.msra.mxu0 0.0
        %355 = vmatprep.subr.mxu0 0.0
        %356 = vmatpush1.msra.mxu0 0.0
        %357 = vmatprep.subr.mxu0 0.0
        %358 = vmatpush1.msra.mxu0 0.0
        %359 = vmatprep.subr.mxu0 0.0
        %360 = vmatpush1.msra.mxu0 0.0
        %361 = vmatprep.subr.mxu0 0.0
        %362 = vmatpush1.msra.mxu0 0.0
        %363 = vmatprep.subr.mxu0 0.0
        %364 = vmatpush1.msra.mxu0 0.0
        %365 = vmatprep.subr.mxu0 0.0
        %366 = vmatpush1.msra.mxu0 0.0
        %367 = vmatprep.subr.mxu0 0.0
        %368 = vmatpush1.msra.mxu0 0.0
        %369 = vmatprep.subr.mxu0 0.0
        %370 = vmatpush1.msra.mxu0 0.0
        %371 = vmatprep.subr.mxu0 0.0
        %372 = vmatpush1.msra.mxu0 0.0
        %373 = vmatprep.subr.mxu0 0.0
        %374 = vmatpush1.msra.mxu0 0.0
        %375 = vmatprep.subr.mxu0 0.0
        %376 = vmatpush1.msra.mxu0 0.0
        %377 = vmatprep.subr.mxu0 0.0
        %378 = vmatpush1.msra.mxu0 0.0
        %379 = vmatprep.subr.mxu0 0.0
        %380 = vmatpush1.msra.mxu0 0.0
        %381 = vmatprep.subr.mxu0 0.0
        %382 = vmatpush1.msra.mxu0 0.0
        %383 = vmatprep.subr.mxu0 0.0
        %384 = vmatpush1.msra.mxu0 0.0
        %385 = vmatprep.subr.mxu0 0.0
        %386 = vmatpush1.msra.mxu0 0.0
        %387 = vmatprep.subr.mxu0 0.0
        %388 = vmatpush1.msra.mxu0 0.0
        %389 = vmatprep.subr.mxu0 0.0
        %390 = vmatpush1.msra.mxu0 0.0
        %391 = vmatprep.subr.mxu0 0.0
        %392 = vmatpush1.msra.mxu0 0.0
        %393 = vmatprep.subr.mxu0 0.0
        %394 = vmatpush1.msra.mxu0 0.0
        %395 = vmatprep.subr.mxu0 0.0
        %396 = vmatpush1.msra.mxu0 0.0
        %397 = vmatprep.subr.mxu0 0.0
        %398 = vmatpush1.msra.mxu0 0.0
        %399 = vmatprep.subr.mxu0 0.0
        %400 = vmatpush1.msra.mxu0 0.0
        %401 = vmatprep.subr.mxu0 0.0
        %402 = vmatpush1.msra.mxu0 0.0
        %403 = vmatprep.mubr.f32.mxu0 0.0
        %404 = vmatmul.mubr.f32.gmra.mrb[0].mxu0 %v337
        %v405 = vpop.f32.mrb[0].mxu0
        %v406 = vadd.f32 %v333, %v405
        %v407 = vpop.f32.mrb[0].mxu0
        %408 = vdwg.mxu0
        %v409 = vld [vmem:[%s4] sm:$0x3]
        %v410 = vld [vmem:[%s5] sm:$0x1]
        %v411 = vxor.u32 %v406, 2147483648
        %v412 = vmul.f32 %v411, 1.442695
        %v413 = vpow.pop %v412
        %v414 = vadd.f32 %v413, 1.0
        %v415 = vrcp.pop %v414
        %v416 = vmul.f32 1.0, %v415
        %v417 = vtanh.pop %v406
        %v418 = vmul.f32 %v416, 0.0
        %420 = vrot.lane.b32.xlu0 %v417, 64
        %v421 = vpop.permute.xlu0 %420
        %v423 = vmul.f32 %v416, %v421
        %425 = vrot.lane.b32.xlu0 %v423, 32
        %v426 = vpop.permute.xlu0 %425
        %v428 = vadd.f32 %v418, %v426
        %v429 = vtanh.pop %v428
        %431 = vrot.lane.b32.xlu0 %v429, 64
        %v432 = vpop.permute.xlu0 %431
        %v434 = vmul.f32 %v416, %v432
        %v435 = vlaneseq
        %v436 = vand.u32 %v435, 127
        %438 = vrot.lane.b32.xlu0 %v434, 32
        %v439 = vpop.permute.xlu0 %438
        %v441 = vsel %vm335, %v439, 0.0
        %v442 = vld [vmem:[#allocation7] sm:$0xff]
        %v443 = vld [vmem:[#allocation7 + $0x8] sm:$0xff]
        %v444 = vld [vmem:[#allocation7 + $0x10] sm:$0xff]
        %v445 = vld [vmem:[#allocation7 + $0x18] sm:$0xff]
        %v446 = vld [vmem:[#allocation7 + $0x20] sm:$0xff]
        %v447 = vld [vmem:[#allocation7 + $0x28] sm:$0xff]
        %v448 = vld [vmem:[#allocation7 + $0x30] sm:$0xff]
        %v449 = vld [vmem:[#allocation7 + $0x38] sm:$0xff]
        %v450 = vld [vmem:[#allocation7 + $0x40] sm:$0xff]
        %v451 = vld [vmem:[#allocation7 + $0x48] sm:$0xff]
        %v452 = vld [vmem:[#allocation7 + $0x50] sm:$0xff]
        %v453 = vld [vmem:[#allocation7 + $0x58] sm:$0xff]
        %v454 = vld [vmem:[#allocation7 + $0x60] sm:$0xff]
        %v455 = vld [vmem:[#allocation7 + $0x68] sm:$0xff]
        %v456 = vld [vmem:[#allocation7 + $0x70] sm:$0xff]
        %v457 = vld [vmem:[#allocation7 + $0x78] sm:$0xff]
        %v458 = vld [vmem:[#allocation7 + $0x80] sm:$0xff]
        %v459 = vld [vmem:[#allocation7 + $0x88] sm:$0xff]
        %v460 = vld [vmem:[#allocation7 + $0x90] sm:$0xff]
        %v461 = vld [vmem:[#allocation7 + $0x98] sm:$0xff]
        %v462 = vld [vmem:[#allocation7 + $0xa0] sm:$0xff]
        %v463 = vld [vmem:[#allocation7 + $0xa8] sm:$0xff]
        %v464 = vld [vmem:[#allocation7 + $0xb0] sm:$0xff]
        %v465 = vld [vmem:[#allocation7 + $0xb8] sm:$0xff]
        %v466 = vld [vmem:[#allocation7 + $0xc0] sm:$0xff]
        %v467 = vld [vmem:[#allocation7 + $0xc8] sm:$0xff]
        %v468 = vld [vmem:[#allocation7 + $0xd0] sm:$0xff]
        %v469 = vld [vmem:[#allocation7 + $0xd8] sm:$0xff]
        %v470 = vld [vmem:[#allocation7 + $0xe0] sm:$0xff]
        %v471 = vld [vmem:[#allocation7 + $0xe8] sm:$0xff]
        %v472 = vld [vmem:[#allocation7 + $0xf0] sm:$0xff]
        %v473 = vld [vmem:[#allocation7 + $0xf8] sm:$0xff]
        %v474 = vld [vmem:[#allocation7 + $0x100] sm:$0xff]
        %v475 = vld [vmem:[#allocation7 + $0x108] sm:$0xff]
        %v476 = vld [vmem:[#allocation7 + $0x110] sm:$0xff]
        %v477 = vld [vmem:[#allocation7 + $0x118] sm:$0xff]
        %vm478 = vcmask 785408
        %v480 = vsel %vm478, %v441, 0
        %482 = vmatprep.subr.mxu0 %v443
        %483 = vmatpush1.msra.mxu0 %v442
        %484 = vmatprep.subr.mxu0 %v446
        %485 = vmatpush1.msra.mxu0 %v445
        %486 = vmatprep.subr.mxu0 %v449
        %487 = vmatpush1.msra.mxu0 %v448
        %488 = vmatprep.subr.mxu0 %v452
        %489 = vmatpush1.msra.mxu0 %v451
        %490 = vmatprep.subr.mxu0 %v455
        %491 = vmatpush1.msra.mxu0 %v454
        %492 = vmatprep.subr.mxu0 %v458
        %493 = vmatpush1.msra.mxu0 %v457
        %494 = vmatprep.subr.mxu0 %v461
        %495 = vmatpush1.msra.mxu0 %v460
        %496 = vmatprep.subr.mxu0 %v464
        %497 = vmatpush1.msra.mxu0 %v463
        %498 = vmatprep.subr.mxu0 %v467
        %499 = vmatpush1.msra.mxu0 %v466
        %500 = vmatprep.subr.mxu0 %v470
        %501 = vmatpush1.msra.mxu0 %v469
        %502 = vmatprep.subr.mxu0 %v473
        %503 = vmatpush1.msra.mxu0 %v472
        %504 = vmatprep.subr.mxu0 %v476
        %505 = vmatpush1.msra.mxu0 %v475
        %506 = vmatprep.subr.mxu0 0.0
        %507 = vmatpush1.msra.mxu0 0.0
        %508 = vmatprep.subr.mxu0 0.0
        %509 = vmatpush1.msra.mxu0 0.0
        %510 = vmatprep.subr.mxu0 0.0
        %511 = vmatpush1.msra.mxu0 0.0
        %512 = vmatprep.subr.mxu0 0.0
        %513 = vmatpush1.msra.mxu0 0.0
        %514 = vmatprep.subr.mxu0 0.0
        %515 = vmatpush1.msra.mxu0 0.0
        %516 = vmatprep.subr.mxu0 0.0
        %517 = vmatpush1.msra.mxu0 0.0
        %518 = vmatprep.subr.mxu0 0.0
        %519 = vmatpush1.msra.mxu0 0.0
        %520 = vmatprep.subr.mxu0 0.0
        %521 = vmatpush1.msra.mxu0 0.0
        %522 = vmatprep.subr.mxu0 0.0
        %523 = vmatpush1.msra.mxu0 0.0
        %524 = vmatprep.subr.mxu0 0.0
        %525 = vmatpush1.msra.mxu0 0.0
        %526 = vmatprep.subr.mxu0 0.0
        %527 = vmatpush1.msra.mxu0 0.0
        %528 = vmatprep.subr.mxu0 0.0
        %529 = vmatpush1.msra.mxu0 0.0
        %530 = vmatprep.subr.mxu0 0.0
        %531 = vmatpush1.msra.mxu0 0.0
        %532 = vmatprep.subr.mxu0 0.0
        %533 = vmatpush1.msra.mxu0 0.0
        %534 = vmatprep.subr.mxu0 0.0
        %535 = vmatpush1.msra.mxu0 0.0
        %536 = vmatprep.subr.mxu0 0.0
        %537 = vmatpush1.msra.mxu0 0.0
        %538 = vmatprep.subr.mxu0 0.0
        %539 = vmatpush1.msra.mxu0 0.0
        %540 = vmatprep.subr.mxu0 0.0
        %541 = vmatpush1.msra.mxu0 0.0
        %542 = vmatprep.subr.mxu0 0.0
        %543 = vmatpush1.msra.mxu0 0.0
        %544 = vmatprep.subr.mxu0 0.0
        %545 = vmatpush1.msra.mxu0 0.0
        %546 = vmatprep.mubr.f32.mxu0 0.0
        %547 = vmatmul.mubr.f32.gmra.mrb[0].mxu0 %v480
        %v548 = vpop.f32.mrb[0].mxu0
        %v549 = vadd.f32 0.0, %v548
        %v550 = vpop.f32.mrb[0].mxu0
        %v551 = vadd.f32 0.0, %v550
        %552 = vdwg.mxu0
        %553 = vmatprep.subr.mxu0 0.0
        %554 = vmatpush1.msra.mxu0 %v444
        %555 = vmatprep.subr.mxu0 0.0
        %556 = vmatpush1.msra.mxu0 %v447
        %557 = vmatprep.subr.mxu0 0.0
        %558 = vmatpush1.msra.mxu0 %v450
        %559 = vmatprep.subr.mxu0 0.0
        %560 = vmatpush1.msra.mxu0 %v453
        %561 = vmatprep.subr.mxu0 0.0
        %562 = vmatpush1.msra.mxu0 %v456
        %563 = vmatprep.subr.mxu0 0.0
        %564 = vmatpush1.msra.mxu0 %v459
        %565 = vmatprep.subr.mxu0 0.0
        %566 = vmatpush1.msra.mxu0 %v462
        %567 = vmatprep.subr.mxu0 0.0
        %568 = vmatpush1.msra.mxu0 %v465
        %569 = vmatprep.subr.mxu0 0.0
        %570 = vmatpush1.msra.mxu0 %v468
        %571 = vmatprep.subr.mxu0 0.0
        %572 = vmatpush1.msra.mxu0 %v471
        %573 = vmatprep.subr.mxu0 0.0
        %574 = vmatpush1.msra.mxu0 %v474
        %575 = vmatprep.subr.mxu0 0.0
        %576 = vmatpush1.msra.mxu0 %v477
        %577 = vmatprep.subr.mxu0 0.0
        %578 = vmatpush1.msra.mxu0 0.0
        %579 = vmatprep.subr.mxu0 0.0
        %580 = vmatpush1.msra.mxu0 0.0
        %581 = vmatprep.subr.mxu0 0.0
        %582 = vmatpush1.msra.mxu0 0.0
        %583 = vmatprep.subr.mxu0 0.0
        %584 = vmatpush1.msra.mxu0 0.0
        %585 = vmatprep.subr.mxu0 0.0
        %586 = vmatpush1.msra.mxu0 0.0
        %587 = vmatprep.subr.mxu0 0.0
        %588 = vmatpush1.msra.mxu0 0.0
        %589 = vmatprep.subr.mxu0 0.0
        %590 = vmatpush1.msra.mxu0 0.0
        %591 = vmatprep.subr.mxu0 0.0
        %592 = vmatpush1.msra.mxu0 0.0
        %593 = vmatprep.subr.mxu0 0.0
        %594 = vmatpush1.msra.mxu0 0.0
        %595 = vmatprep.subr.mxu0 0.0
        %596 = vmatpush1.msra.mxu0 0.0
        %597 = vmatprep.subr.mxu0 0.0
        %598 = vmatpush1.msra.mxu0 0.0
        %599 = vmatprep.subr.mxu0 0.0
        %600 = vmatpush1.msra.mxu0 0.0
        %601 = vmatprep.subr.mxu0 0.0
        %602 = vmatpush1.msra.mxu0 0.0
        %603 = vmatprep.subr.mxu0 0.0
        %604 = vmatpush1.msra.mxu0 0.0
        %605 = vmatprep.subr.mxu0 0.0
        %606 = vmatpush1.msra.mxu0 0.0
        %607 = vmatprep.subr.mxu0 0.0
        %608 = vmatpush1.msra.mxu0 0.0
        %609 = vmatprep.subr.mxu0 0.0
        %610 = vmatpush1.msra.mxu0 0.0
        %611 = vmatprep.subr.mxu0 0.0
        %612 = vmatpush1.msra.mxu0 0.0
        %613 = vmatprep.subr.mxu0 0.0
        %614 = vmatpush1.msra.mxu0 0.0
        %615 = vmatprep.subr.mxu0 0.0
        %616 = vmatpush1.msra.mxu0 0.0
        %617 = vmatprep.mubr.f32.mxu0 0.0
        %618 = vmatmul.mubr.f32.gmra.mrb[0].mxu0 %v480
        %v619 = vpop.f32.mrb[0].mxu0
        %v620 = vadd.f32 0.0, %v619
        %v621 = vpop.f32.mrb[0].mxu0
        %622 = vdwg.mxu0
        %v624 = vlaneseq
        %v625 = vshrl.u32 %v624, 7
        %v626 = vsub.s32 0, %v625
        %v627 = vrot.slane %v409, %v626
        %v628 = vlaneseq
        %v629 = vshrl.u32 %v628, 7
        %v630 = vsub.s32 1, %v629
        %v631 = vrot.slane %v409, %v630
        %v634 = vadd.f32 %v551, %v627
        %v635 = vadd.f32 %v620, %v631
        %v636 = vxor.u32 %v634, 2147483648
        %v637 = vxor.u32 %v635, 2147483648
        %v638 = vmul.f32 %v636, 1.442695
        %v639 = vpow.pop %v638
        %v640 = vmul.f32 %v637, 1.442695
        %v641 = vpow.pop %v640
        %v642 = vadd.f32 %v639, 1.0
        %v643 = vadd.f32 %v641, 1.0
        %v644 = vrcp.pop %v642
        %v645 = vmul.f32 1.0, %v644
        %v646 = vrcp.pop %v643
        %v647 = vmul.f32 1.0, %v646
        %v648 = vtanh.pop %v635
        %v649 = vmul.f32 %v645, 0.0
        %651 = vrot.lane.b32.xlu0 %v648, 64
        %v652 = vpop.permute.xlu0 %651
        %v654 = vmul.f32 %v645, %v652
        %656 = vrot.lane.b32.xlu0 %v654, 64
        %v657 = vpop.permute.xlu0 %656
        %v659 = vadd.f32 %v649, %v657
        %v660 = vtanh.pop %v659
        %662 = vrot.lane.b32.xlu0 %v660, 64
        %v663 = vpop.permute.xlu0 %662
        %v665 = vmul.f32 %v647, %v663
        %v667 = vlaneseq
        %v668 = vshrl.u32 %v667, 7
        %v669 = vsub.s32 0, %v668
        %v670 = vrot.slane %v410, %v669
        %v672 = vmul.f32 %v665, %v670
        %vm673 = vcmask 523264
        %v674 = vsel %vm673, %v672, 0.0
        %675 = vadd.xlane.f32.xlu0 %v674
        %v676 = vpop.xlane.xlu0 %675
        %vm677 = vcmp.eq.s32.totalorder %v436, 0
        %v678 = vsel %vm677, %v676, 0.0
        %v679 = vadd.f32 %v406, %v549
        %v680 = vxor.u32 %v679, 2147483648
        %v681 = vmul.f32 %v680, 1.442695
        %v682 = vpow.pop %v681
        %v683 = vadd.f32 %v682, 1.0
        %v684 = vrcp.pop %v683
        %v685 = vmul.f32 1.0, %v684
        %v686 = vtanh.pop %v679
        %v687 = vmul.f32 %v685, %v428
        %689 = vrot.lane.b32.xlu0 %v686, 64
        %v690 = vpop.permute.xlu0 %689
        %v692 = vmul.f32 %v685, %v690
        %694 = vrot.lane.b32.xlu0 %v692, 32
        %v695 = vpop.permute.xlu0 %694
        %v697 = vadd.f32 %v687, %v695
        %v698 = vtanh.pop %v697
        %700 = vrot.lane.b32.xlu0 %v698, 64
        %v701 = vpop.permute.xlu0 %700
        %v703 = vmul.f32 %v685, %v701
        %705 = vrot.lane.b32.xlu0 %v703, 32
        %v706 = vpop.permute.xlu0 %705
        %709 = vrot.lane.b32.xlu0 %v665, 32
        %v710 = vpop.permute.xlu0 %709
        %v712 = vsel %vm335, %v706, %v710
        %v714 = vsel %vm478, %v712, 0
        %716 = vmatprep.subr.mxu0 %v443
        %717 = vmatpush1.msra.mxu0 %v442
        %718 = vmatprep.subr.mxu0 %v446
        %719 = vmatpush1.msra.mxu0 %v445
        %720 = vmatprep.subr.mxu0 %v449
        %721 = vmatpush1.msra.mxu0 %v448
        %722 = vmatprep.subr.mxu0 %v452
        %723 = vmatpush1.msra.mxu0 %v451
        %724 = vmatprep.subr.mxu0 %v455
        %725 = vmatpush1.msra.mxu0 %v454
        %726 = vmatprep.subr.mxu0 %v458
        %727 = vmatpush1.msra.mxu0 %v457
        %728 = vmatprep.subr.mxu0 %v461
        %729 = vmatpush1.msra.mxu0 %v460
        %730 = vmatprep.subr.mxu0 %v464
        %731 = vmatpush1.msra.mxu0 %v463
        %732 = vmatprep.subr.mxu0 %v467
        %733 = vmatpush1.msra.mxu0 %v466
        %734 = vmatprep.subr.mxu0 %v470
        %735 = vmatpush1.msra.mxu0 %v469
        %736 = vmatprep.subr.mxu0 %v473
        %737 = vmatpush1.msra.mxu0 %v472
        %738 = vmatprep.subr.mxu0 %v476
        %739 = vmatpush1.msra.mxu0 %v475
        %740 = vmatprep.subr.mxu0 0.0
        %741 = vmatpush1.msra.mxu0 0.0
        %742 = vmatprep.subr.mxu0 0.0
        %743 = vmatpush1.msra.mxu0 0.0
        %744 = vmatprep.subr.mxu0 0.0
        %745 = vmatpush1.msra.mxu0 0.0
        %746 = vmatprep.subr.mxu0 0.0
        %747 = vmatpush1.msra.mxu0 0.0
        %748 = vmatprep.subr.mxu0 0.0
        %749 = vmatpush1.msra.mxu0 0.0
        %750 = vmatprep.subr.mxu0 0.0
        %751 = vmatpush1.msra.mxu0 0.0
        %752 = vmatprep.subr.mxu0 0.0
        %753 = vmatpush1.msra.mxu0 0.0
        %754 = vmatprep.subr.mxu0 0.0
        %755 = vmatpush1.msra.mxu0 0.0
        %756 = vmatprep.subr.mxu0 0.0
        %757 = vmatpush1.msra.mxu0 0.0
        %758 = vmatprep.subr.mxu0 0.0
        %759 = vmatpush1.msra.mxu0 0.0
        %760 = vmatprep.subr.mxu0 0.0
        %761 = vmatpush1.msra.mxu0 0.0
        %762 = vmatprep.subr.mxu0 0.0
        %763 = vmatpush1.msra.mxu0 0.0
        %764 = vmatprep.subr.mxu0 0.0
        %765 = vmatpush1.msra.mxu0 0.0
        %766 = vmatprep.subr.mxu0 0.0
        %767 = vmatpush1.msra.mxu0 0.0
        %768 = vmatprep.subr.mxu0 0.0
        %769 = vmatpush1.msra.mxu0 0.0
        %770 = vmatprep.subr.mxu0 0.0
        %771 = vmatpush1.msra.mxu0 0.0
        %772 = vmatprep.subr.mxu0 0.0
        %773 = vmatpush1.msra.mxu0 0.0
        %774 = vmatprep.subr.mxu0 0.0
        %775 = vmatpush1.msra.mxu0 0.0
        %776 = vmatprep.subr.mxu0 0.0
        %777 = vmatpush1.msra.mxu0 0.0
        %778 = vmatprep.subr.mxu0 0.0
        %779 = vmatpush1.msra.mxu0 0.0
        %780 = vmatprep.mubr.f32.mxu0 0.0
        %781 = vmatmul.mubr.f32.gmra.mrb[0].mxu0 %v714
        %v782 = vpop.f32.mrb[0].mxu0
        %v783 = vadd.f32 0.0, %v782
        %v784 = vpop.f32.mrb[0].mxu0
        %v785 = vadd.f32 0.0, %v784
        %786 = vdwg.mxu0
        %787 = vmatprep.subr.mxu0 0.0
        %788 = vmatpush1.msra.mxu0 %v444
        %789 = vmatprep.subr.mxu0 0.0
        %790 = vmatpush1.msra.mxu0 %v447
        %791 = vmatprep.subr.mxu0 0.0
        %792 = vmatpush1.msra.mxu0 %v450
        %793 = vmatprep.subr.mxu0 0.0
        %794 = vmatpush1.msra.mxu0 %v453
        %795 = vmatprep.subr.mxu0 0.0
        %796 = vmatpush1.msra.mxu0 %v456
        %797 = vmatprep.subr.mxu0 0.0
        %798 = vmatpush1.msra.mxu0 %v459
        %799 = vmatprep.subr.mxu0 0.0
        %800 = vmatpush1.msra.mxu0 %v462
        %801 = vmatprep.subr.mxu0 0.0
        %802 = vmatpush1.msra.mxu0 %v465
        %803 = vmatprep.subr.mxu0 0.0
        %804 = vmatpush1.msra.mxu0 %v468
        %805 = vmatprep.subr.mxu0 0.0
        %806 = vmatpush1.msra.mxu0 %v471
        %807 = vmatprep.subr.mxu0 0.0
        %808 = vmatpush1.msra.mxu0 %v474
        %809 = vmatprep.subr.mxu0 0.0
        %810 = vmatpush1.msra.mxu0 %v477
        %811 = vmatprep.subr.mxu0 0.0
        %812 = vmatpush1.msra.mxu0 0.0
        %813 = vmatprep.subr.mxu0 0.0
        %814 = vmatpush1.msra.mxu0 0.0
        %815 = vmatprep.subr.mxu0 0.0
        %816 = vmatpush1.msra.mxu0 0.0
        %817 = vmatprep.subr.mxu0 0.0
        %818 = vmatpush1.msra.mxu0 0.0
        %819 = vmatprep.subr.mxu0 0.0
        %820 = vmatpush1.msra.mxu0 0.0
        %821 = vmatprep.subr.mxu0 0.0
        %822 = vmatpush1.msra.mxu0 0.0
        %823 = vmatprep.subr.mxu0 0.0
        %824 = vmatpush1.msra.mxu0 0.0
        %825 = vmatprep.subr.mxu0 0.0
        %826 = vmatpush1.msra.mxu0 0.0
        %827 = vmatprep.subr.mxu0 0.0
        %828 = vmatpush1.msra.mxu0 0.0
        %829 = vmatprep.subr.mxu0 0.0
        %830 = vmatpush1.msra.mxu0 0.0
        %831 = vmatprep.subr.mxu0 0.0
        %832 = vmatpush1.msra.mxu0 0.0
        %833 = vmatprep.subr.mxu0 0.0
        %834 = vmatpush1.msra.mxu0 0.0
        %835 = vmatprep.subr.mxu0 0.0
        %836 = vmatpush1.msra.mxu0 0.0
        %837 = vmatprep.subr.mxu0 0.0
        %838 = vmatpush1.msra.mxu0 0.0
        %839 = vmatprep.subr.mxu0 0.0
        %840 = vmatpush1.msra.mxu0 0.0
        %841 = vmatprep.subr.mxu0 0.0
        %842 = vmatpush1.msra.mxu0 0.0
        %843 = vmatprep.subr.mxu0 0.0
        %844 = vmatpush1.msra.mxu0 0.0
        %845 = vmatprep.subr.mxu0 0.0
        %846 = vmatpush1.msra.mxu0 0.0
        %847 = vmatprep.subr.mxu0 0.0
        %848 = vmatpush1.msra.mxu0 0.0
        %849 = vmatprep.subr.mxu0 0.0
        %850 = vmatpush1.msra.mxu0 0.0
        %851 = vmatprep.mubr.f32.mxu0 0.0
        %852 = vmatmul.mubr.f32.gmra.mrb[0].mxu0 %v714
        %v853 = vpop.f32.mrb[0].mxu0
        %v854 = vadd.f32 0.0, %v853
        %v855 = vpop.f32.mrb[0].mxu0
        %856 = vdwg.mxu0
        %v857 = vadd.f32 %v785, %v627
        %v858 = vadd.f32 %v854, %v631
        %v859 = vxor.u32 %v857, 2147483648
        %v860 = vxor.u32 %v858, 2147483648
        %v861 = vmul.f32 %v859, 1.442695
        %v862 = vpow.pop %v861
        %v863 = vmul.f32 %v860, 1.442695
        %v864 = vpow.pop %v863
        %v865 = vadd.f32 %v862, 1.0
        %v866 = vadd.f32 %v864, 1.0
        %v867 = vrcp.pop %v865
        %v868 = vmul.f32 1.0, %v867
        %v869 = vrcp.pop %v866
        %v870 = vmul.f32 1.0, %v869
        %v871 = vtanh.pop %v858
        %v872 = vmul.f32 %v868, %v659
        %874 = vrot.lane.b32.xlu0 %v871, 64
        %v875 = vpop.permute.xlu0 %874
        %v877 = vmul.f32 %v868, %v875
        %879 = vrot.lane.b32.xlu0 %v877, 64
        %v880 = vpop.permute.xlu0 %879
        %v882 = vadd.f32 %v872, %v880
        %v883 = vtanh.pop %v882
        %885 = vrot.lane.b32.xlu0 %v883, 64
        %v886 = vpop.permute.xlu0 %885
        %v888 = vmul.f32 %v870, %v886
        %v889 = vmul.f32 %v888, %v670
        %v890 = vsel %vm673, %v889, 0.0
        %891 = vadd.xlane.f32.xlu0 %v890
        %v892 = vpop.xlane.xlu0 %891
        %vm893 = vcmp.eq.s32.totalorder %v436, 1
        %v894 = vsel %vm893, %v892, %v678
        %v895 = vadd.f32 %v406, %v783
        %v896 = vxor.u32 %v895, 2147483648
        %v897 = vmul.f32 %v896, 1.442695
        %v898 = vpow.pop %v897
        %v899 = vadd.f32 %v898, 1.0
        %v900 = vrcp.pop %v899
        %v901 = vmul.f32 1.0, %v900
        %v902 = vtanh.pop %v895
        %v903 = vmul.f32 %v901, %v697
        %905 = vrot.lane.b32.xlu0 %v902, 64
        %v906 = vpop.permute.xlu0 %905
        %v908 = vmul.f32 %v901, %v906
        %910 = vrot.lane.b32.xlu0 %v908, 32
        %v911 = vpop.permute.xlu0 %910
        %v913 = vadd.f32 %v903, %v911
        %v914 = vtanh.pop %v913
        %916 = vrot.lane.b32.xlu0 %v914, 64
        %v917 = vpop.permute.xlu0 %916
        %v919 = vmul.f32 %v901, %v917
        %921 = vrot.lane.b32.xlu0 %v919, 32
        %v922 = vpop.permute.xlu0 %921
        %925 = vrot.lane.b32.xlu0 %v888, 32
        %v926 = vpop.permute.xlu0 %925
        %v928 = vsel %vm335, %v922, %v926
        %v930 = vsel %vm478, %v928, 0
        %932 = vmatprep.subr.mxu0 %v443
        %933 = vmatpush1.msra.mxu0 %v442
        %934 = vmatprep.subr.mxu0 %v446
        %935 = vmatpush1.msra.mxu0 %v445
        %936 = vmatprep.subr.mxu0 %v449
        %937 = vmatpush1.msra.mxu0 %v448
        %938 = vmatprep.subr.mxu0 %v452
        %939 = vmatpush1.msra.mxu0 %v451
        %940 = vmatprep.subr.mxu0 %v455
        %941 = vmatpush1.msra.mxu0 %v454
        %942 = vmatprep.subr.mxu0 %v458
        %943 = vmatpush1.msra.mxu0 %v457
        %944 = vmatprep.subr.mxu0 %v461
        %945 = vmatpush1.msra.mxu0 %v460
        %946 = vmatprep.subr.mxu0 %v464
        %947 = vmatpush1.msra.mxu0 %v463
        %948 = vmatprep.subr.mxu0 %v467
        %949 = vmatpush1.msra.mxu0 %v466
        %950 = vmatprep.subr.mxu0 %v470
        %951 = vmatpush1.msra.mxu0 %v469
        %952 = vmatprep.subr.mxu0 %v473
        %953 = vmatpush1.msra.mxu0 %v472
        %954 = vmatprep.subr.mxu0 %v476
        %955 = vmatpush1.msra.mxu0 %v475
        %956 = vmatprep.subr.mxu0 0.0
        %957 = vmatpush1.msra.mxu0 0.0
        %958 = vmatprep.subr.mxu0 0.0
        %959 = vmatpush1.msra.mxu0 0.0
        %960 = vmatprep.subr.mxu0 0.0
        %961 = vmatpush1.msra.mxu0 0.0
        %962 = vmatprep.subr.mxu0 0.0
        %963 = vmatpush1.msra.mxu0 0.0
        %964 = vmatprep.subr.mxu0 0.0
        %965 = vmatpush1.msra.mxu0 0.0
        %966 = vmatprep.subr.mxu0 0.0
        %967 = vmatpush1.msra.mxu0 0.0
        %968 = vmatprep.subr.mxu0 0.0
        %969 = vmatpush1.msra.mxu0 0.0
        %970 = vmatprep.subr.mxu0 0.0
        %971 = vmatpush1.msra.mxu0 0.0
        %972 = vmatprep.subr.mxu0 0.0
        %973 = vmatpush1.msra.mxu0 0.0
        %974 = vmatprep.subr.mxu0 0.0
        %975 = vmatpush1.msra.mxu0 0.0
        %976 = vmatprep.subr.mxu0 0.0
        %977 = vmatpush1.msra.mxu0 0.0
        %978 = vmatprep.subr.mxu0 0.0
        %979 = vmatpush1.msra.mxu0 0.0
        %980 = vmatprep.subr.mxu0 0.0
        %981 = vmatpush1.msra.mxu0 0.0
        %982 = vmatprep.subr.mxu0 0.0
        %983 = vmatpush1.msra.mxu0 0.0
        %984 = vmatprep.subr.mxu0 0.0
        %985 = vmatpush1.msra.mxu0 0.0
        %986 = vmatprep.subr.mxu0 0.0
        %987 = vmatpush1.msra.mxu0 0.0
        %988 = vmatprep.subr.mxu0 0.0
        %989 = vmatpush1.msra.mxu0 0.0
        %990 = vmatprep.subr.mxu0 0.0
        %991 = vmatpush1.msra.mxu0 0.0
        %992 = vmatprep.subr.mxu0 0.0
        %993 = vmatpush1.msra.mxu0 0.0
        %994 = vmatprep.subr.mxu0 0.0
        %995 = vmatpush1.msra.mxu0 0.0
        %996 = vmatprep.mubr.f32.mxu0 0.0
        %997 = vmatmul.mubr.f32.gmra.mrb[0].mxu0 %v930
        %v998 = vpop.f32.mrb[0].mxu0
        %v999 = vadd.f32 0.0, %v998
        %v1000 = vpop.f32.mrb[0].mxu0
        %v1001 = vadd.f32 0.0, %v1000
        %1002 = vdwg.mxu0
        %1003 = vmatprep.subr.mxu0 0.0
        %1004 = vmatpush1.msra.mxu0 %v444
        %1005 = vmatprep.subr.mxu0 0.0
        %1006 = vmatpush1.msra.mxu0 %v447
        %1007 = vmatprep.subr.mxu0 0.0
        %1008 = vmatpush1.msra.mxu0 %v450
        %1009 = vmatprep.subr.mxu0 0.0
        %1010 = vmatpush1.msra.mxu0 %v453
        %1011 = vmatprep.subr.mxu0 0.0
        %1012 = vmatpush1.msra.mxu0 %v456
        %1013 = vmatprep.subr.mxu0 0.0
        %1014 = vmatpush1.msra.mxu0 %v459
        %1015 = vmatprep.subr.mxu0 0.0
        %1016 = vmatpush1.msra.mxu0 %v462
        %1017 = vmatprep.subr.mxu0 0.0
        %1018 = vmatpush1.msra.mxu0 %v465
        %1019 = vmatprep.subr.mxu0 0.0
        %1020 = vmatpush1.msra.mxu0 %v468
        %1021 = vmatprep.subr.mxu0 0.0
        %1022 = vmatpush1.msra.mxu0 %v471
        %1023 = vmatprep.subr.mxu0 0.0
        %1024 = vmatpush1.msra.mxu0 %v474
        %1025 = vmatprep.subr.mxu0 0.0
        %1026 = vmatpush1.msra.mxu0 %v477
        %1027 = vmatprep.subr.mxu0 0.0
        %1028 = vmatpush1.msra.mxu0 0.0
        %1029 = vmatprep.subr.mxu0 0.0
        %1030 = vmatpush1.msra.mxu0 0.0
        %1031 = vmatprep.subr.mxu0 0.0
        %1032 = vmatpush1.msra.mxu0 0.0
        %1033 = vmatprep.subr.mxu0 0.0
        %1034 = vmatpush1.msra.mxu0 0.0
        %1035 = vmatprep.subr.mxu0 0.0
        %1036 = vmatpush1.msra.mxu0 0.0
        %1037 = vmatprep.subr.mxu0 0.0
        %1038 = vmatpush1.msra.mxu0 0.0
        %1039 = vmatprep.subr.mxu0 0.0
        %1040 = vmatpush1.msra.mxu0 0.0
        %1041 = vmatprep.subr.mxu0 0.0
        %1042 = vmatpush1.msra.mxu0 0.0
        %1043 = vmatprep.subr.mxu0 0.0
        %1044 = vmatpush1.msra.mxu0 0.0
        %1045 = vmatprep.subr.mxu0 0.0
        %1046 = vmatpush1.msra.mxu0 0.0
        %1047 = vmatprep.subr.mxu0 0.0
        %1048 = vmatpush1.msra.mxu0 0.0
        %1049 = vmatprep.subr.mxu0 0.0
        %1050 = vmatpush1.msra.mxu0 0.0
        %1051 = vmatprep.subr.mxu0 0.0
        %1052 = vmatpush1.msra.mxu0 0.0
        %1053 = vmatprep.subr.mxu0 0.0
        %1054 = vmatpush1.msra.mxu0 0.0
        %1055 = vmatprep.subr.mxu0 0.0
        %1056 = vmatpush1.msra.mxu0 0.0
        %1057 = vmatprep.subr.mxu0 0.0
        %1058 = vmatpush1.msra.mxu0 0.0
        %1059 = vmatprep.subr.mxu0 0.0
        %1060 = vmatpush1.msra.mxu0 0.0
        %1061 = vmatprep.subr.mxu0 0.0
        %1062 = vmatpush1.msra.mxu0 0.0
        %1063 = vmatprep.subr.mxu0 0.0
        %1064 = vmatpush1.msra.mxu0 0.0
        %1065 = vmatprep.subr.mxu0 0.0
        %1066 = vmatpush1.msra.mxu0 0.0
        %1067 = vmatprep.mubr.f32.mxu0 0.0
        %1068 = vmatmul.mubr.f32.gmra.mrb[0].mxu0 %v930
        %v1069 = vpop.f32.mrb[0].mxu0
        %v1070 = vadd.f32 0.0, %v1069
        %v1071 = vpop.f32.mrb[0].mxu0
        %1072 = vdwg.mxu0
        %v1073 = vadd.f32 %v1001, %v627
        %v1074 = vadd.f32 %v1070, %v631
        %v1075 = vxor.u32 %v1073, 2147483648
        %v1076 = vxor.u32 %v1074, 2147483648
        %v1077 = vmul.f32 %v1075, 1.442695
        %v1078 = vpow.pop %v1077
        %v1079 = vmul.f32 %v1076, 1.442695
        %v1080 = vpow.pop %v1079
        %v1081 = vadd.f32 %v1078, 1.0
        %v1082 = vadd.f32 %v1080, 1.0
        %v1083 = vrcp.pop %v1081
        %v1084 = vmul.f32 1.0, %v1083
        %v1085 = vrcp.pop %v1082
        %v1086 = vmul.f32 1.0, %v1085
        %v1087 = vtanh.pop %v1074
        %v1088 = vmul.f32 %v1084, %v882
        %1090 = vrot.lane.b32.xlu0 %v1087, 64
        %v1091 = vpop.permute.xlu0 %1090
        %v1093 = vmul.f32 %v1084, %v1091
        %1095 = vrot.lane.b32.xlu0 %v1093, 64
        %v1096 = vpop.permute.xlu0 %1095
        %v1098 = vadd.f32 %v1088, %v1096
        %v1099 = vtanh.pop %v1098
        %1101 = vrot.lane.b32.xlu0 %v1099, 64
        %v1102 = vpop.permute.xlu0 %1101
        %v1104 = vmul.f32 %v1086, %v1102
        %v1105 = vmul.f32 %v1104, %v670
        %v1106 = vsel %vm673, %v1105, 0.0
        %1107 = vadd.xlane.f32.xlu0 %v1106
        %v1108 = vpop.xlane.xlu0 %1107
        %vm1109 = vcmp.eq.s32.totalorder %v436, 2
        %v1110 = vsel %vm1109, %v1108, %v894
        %v1111 = vadd.f32 %v406, %v999
        %v1112 = vxor.u32 %v1111, 2147483648
        %v1113 = vmul.f32 %v1112, 1.442695
        %v1114 = vpow.pop %v1113
        %v1115 = vadd.f32 %v1114, 1.0
        %v1116 = vrcp.pop %v1115
        %v1117 = vmul.f32 1.0, %v1116
        %v1118 = vtanh.pop %v1111
        %v1119 = vmul.f32 %v1117, %v913
        %1121 = vrot.lane.b32.xlu0 %v1118, 64
        %v1122 = vpop.permute.xlu0 %1121
        %v1124 = vmul.f32 %v1117, %v1122
        %1126 = vrot.lane.b32.xlu0 %v1124, 32
        %v1127 = vpop.permute.xlu0 %1126
        %v1129 = vadd.f32 %v1119, %v1127
        %v1130 = vtanh.pop %v1129
        %1132 = vrot.lane.b32.xlu0 %v1130, 64
        %v1133 = vpop.permute.xlu0 %1132
        %v1135 = vmul.f32 %v1117, %v1133
        %1137 = vrot.lane.b32.xlu0 %v1135, 32
        %v1138 = vpop.permute.xlu0 %1137
        %1141 = vrot.lane.b32.xlu0 %v1104, 32
        %v1142 = vpop.permute.xlu0 %1141
        %v1144 = vsel %vm335, %v1138, %v1142
        %v1146 = vsel %vm478, %v1144, 0
        %1148 = vmatprep.subr.mxu0 %v443
        %1149 = vmatpush1.msra.mxu0 %v442
        %1150 = vmatprep.subr.mxu0 %v446
        %1151 = vmatpush1.msra.mxu0 %v445
        %1152 = vmatprep.subr.mxu0 %v449
        %1153 = vmatpush1.msra.mxu0 %v448
        %1154 = vmatprep.subr.mxu0 %v452
        %1155 = vmatpush1.msra.mxu0 %v451
        %1156 = vmatprep.subr.mxu0 %v455
        %1157 = vmatpush1.msra.mxu0 %v454
        %1158 = vmatprep.subr.mxu0 %v458
        %1159 = vmatpush1.msra.mxu0 %v457
        %1160 = vmatprep.subr.mxu0 %v461
        %1161 = vmatpush1.msra.mxu0 %v460
        %1162 = vmatprep.subr.mxu0 %v464
        %1163 = vmatpush1.msra.mxu0 %v463
        %1164 = vmatprep.subr.mxu0 %v467
        %1165 = vmatpush1.msra.mxu0 %v466
        %1166 = vmatprep.subr.mxu0 %v470
        %1167 = vmatpush1.msra.mxu0 %v469
        %1168 = vmatprep.subr.mxu0 %v473
        %1169 = vmatpush1.msra.mxu0 %v472
        %1170 = vmatprep.subr.mxu0 %v476
        %1171 = vmatpush1.msra.mxu0 %v475
        %1172 = vmatprep.subr.mxu0 0.0
        %1173 = vmatpush1.msra.mxu0 0.0
        %1174 = vmatprep.subr.mxu0 0.0
        %1175 = vmatpush1.msra.mxu0 0.0
        %1176 = vmatprep.subr.mxu0 0.0
        %1177 = vmatpush1.msra.mxu0 0.0
        %1178 = vmatprep.subr.mxu0 0.0
        %1179 = vmatpush1.msra.mxu0 0.0
        %1180 = vmatprep.subr.mxu0 0.0
        %1181 = vmatpush1.msra.mxu0 0.0
        %1182 = vmatprep.subr.mxu0 0.0
        %1183 = vmatpush1.msra.mxu0 0.0
        %1184 = vmatprep.subr.mxu0 0.0
        %1185 = vmatpush1.msra.mxu0 0.0
        %1186 = vmatprep.subr.mxu0 0.0
        %1187 = vmatpush1.msra.mxu0 0.0
        %1188 = vmatprep.subr.mxu0 0.0
        %1189 = vmatpush1.msra.mxu0 0.0
        %1190 = vmatprep.subr.mxu0 0.0
        %1191 = vmatpush1.msra.mxu0 0.0
        %1192 = vmatprep.subr.mxu0 0.0
        %1193 = vmatpush1.msra.mxu0 0.0
        %1194 = vmatprep.subr.mxu0 0.0
        %1195 = vmatpush1.msra.mxu0 0.0
        %1196 = vmatprep.subr.mxu0 0.0
        %1197 = vmatpush1.msra.mxu0 0.0
        %1198 = vmatprep.subr.mxu0 0.0
        %1199 = vmatpush1.msra.mxu0 0.0
        %1200 = vmatprep.subr.mxu0 0.0
        %1201 = vmatpush1.msra.mxu0 0.0
        %1202 = vmatprep.subr.mxu0 0.0
        %1203 = vmatpush1.msra.mxu0 0.0
        %1204 = vmatprep.subr.mxu0 0.0
        %1205 = vmatpush1.msra.mxu0 0.0
        %1206 = vmatprep.subr.mxu0 0.0
        %1207 = vmatpush1.msra.mxu0 0.0
        %1208 = vmatprep.subr.mxu0 0.0
        %1209 = vmatpush1.msra.mxu0 0.0
        %1210 = vmatprep.subr.mxu0 0.0
        %1211 = vmatpush1.msra.mxu0 0.0
        %1212 = vmatprep.mubr.f32.mxu0 0.0
        %1213 = vmatmul.mubr.f32.gmra.mrb[0].mxu0 %v1146
        %v1214 = vpop.f32.mrb[0].mxu0
        %v1215 = vadd.f32 0.0, %v1214
        %v1216 = vpop.f32.mrb[0].mxu0
        %v1217 = vadd.f32 0.0, %v1216
        %1218 = vdwg.mxu0
        %1219 = vmatprep.subr.mxu0 0.0
        %1220 = vmatpush1.msra.mxu0 %v444
        %1221 = vmatprep.subr.mxu0 0.0
        %1222 = vmatpush1.msra.mxu0 %v447
        %1223 = vmatprep.subr.mxu0 0.0
        %1224 = vmatpush1.msra.mxu0 %v450
        %1225 = vmatprep.subr.mxu0 0.0
        %1226 = vmatpush1.msra.mxu0 %v453
        %1227 = vmatprep.subr.mxu0 0.0
        %1228 = vmatpush1.msra.mxu0 %v456
        %1229 = vmatprep.subr.mxu0 0.0
        %1230 = vmatpush1.msra.mxu0 %v459
        %1231 = vmatprep.subr.mxu0 0.0
        %1232 = vmatpush1.msra.mxu0 %v462
        %1233 = vmatprep.subr.mxu0 0.0
        %1234 = vmatpush1.msra.mxu0 %v465
        %1235 = vmatprep.subr.mxu0 0.0
        %1236 = vmatpush1.msra.mxu0 %v468
        %1237 = vmatprep.subr.mxu0 0.0
        %1238 = vmatpush1.msra.mxu0 %v471
        %1239 = vmatprep.subr.mxu0 0.0
        %1240 = vmatpush1.msra.mxu0 %v474
        %1241 = vmatprep.subr.mxu0 0.0
        %1242 = vmatpush1.msra.mxu0 %v477
        %1243 = vmatprep.subr.mxu0 0.0
        %1244 = vmatpush1.msra.mxu0 0.0
        %1245 = vmatprep.subr.mxu0 0.0
        %1246 = vmatpush1.msra.mxu0 0.0
        %1247 = vmatprep.subr.mxu0 0.0
        %1248 = vmatpush1.msra.mxu0 0.0
        %1249 = vmatprep.subr.mxu0 0.0
        %1250 = vmatpush1.msra.mxu0 0.0
        %1251 = vmatprep.subr.mxu0 0.0
        %1252 = vmatpush1.msra.mxu0 0.0
        %1253 = vmatprep.subr.mxu0 0.0
        %1254 = vmatpush1.msra.mxu0 0.0
        %1255 = vmatprep.subr.mxu0 0.0
        %1256 = vmatpush1.msra.mxu0 0.0
        %1257 = vmatprep.subr.mxu0 0.0
        %1258 = vmatpush1.msra.mxu0 0.0
        %1259 = vmatprep.subr.mxu0 0.0
        %1260 = vmatpush1.msra.mxu0 0.0
        %1261 = vmatprep.subr.mxu0 0.0
        %1262 = vmatpush1.msra.mxu0 0.0
        %1263 = vmatprep.subr.mxu0 0.0
        %1264 = vmatpush1.msra.mxu0 0.0
        %1265 = vmatprep.subr.mxu0 0.0
        %1266 = vmatpush1.msra.mxu0 0.0
        %1267 = vmatprep.subr.mxu0 0.0
        %1268 = vmatpush1.msra.mxu0 0.0
        %1269 = vmatprep.subr.mxu0 0.0
        %1270 = vmatpush1.msra.mxu0 0.0
        %1271 = vmatprep.subr.mxu0 0.0
        %1272 = vmatpush1.msra.mxu0 0.0
        %1273 = vmatprep.subr.mxu0 0.0
        %1274 = vmatpush1.msra.mxu0 0.0
        %1275 = vmatprep.subr.mxu0 0.0
        %1276 = vmatpush1.msra.mxu0 0.0
        %1277 = vmatprep.subr.mxu0 0.0
        %1278 = vmatpush1.msra.mxu0 0.0
        %1279 = vmatprep.subr.mxu0 0.0
        %1280 = vmatpush1.msra.mxu0 0.0
        %1281 = vmatprep.subr.mxu0 0.0
        %1282 = vmatpush1.msra.mxu0 0.0
        %1283 = vmatprep.mubr.f32.mxu0 0.0
        %1284 = vmatmul.mubr.f32.gmra.mrb[0].mxu0 %v1146
        %v1285 = vpop.f32.mrb[0].mxu0
        %v1286 = vadd.f32 0.0, %v1285
        %v1287 = vpop.f32.mrb[0].mxu0
        %1288 = vdwg.mxu0
        %v1289 = vadd.f32 %v1217, %v627
        %v1290 = vadd.f32 %v1286, %v631
        %v1291 = vxor.u32 %v1289, 2147483648
        %v1292 = vxor.u32 %v1290, 2147483648
        %v1293 = vmul.f32 %v1291, 1.442695
        %v1294 = vpow.pop %v1293
        %v1295 = vmul.f32 %v1292, 1.442695
        %v1296 = vpow.pop %v1295
        %v1297 = vadd.f32 %v1294, 1.0
        %v1298 = vadd.f32 %v1296, 1.0
        %v1299 = vrcp.pop %v1297
        %v1300 = vmul.f32 1.0, %v1299
        %v1301 = vrcp.pop %v1298
        %v1302 = vmul.f32 1.0, %v1301
        %v1303 = vtanh.pop %v1290
        %v1304 = vmul.f32 %v1300, %v1098
        %1306 = vrot.lane.b32.xlu0 %v1303, 64
        %v1307 = vpop.permute.xlu0 %1306
        %v1309 = vmul.f32 %v1300, %v1307
        %1311 = vrot.lane.b32.xlu0 %v1309, 64
        %v1312 = vpop.permute.xlu0 %1311
        %v1314 = vadd.f32 %v1304, %v1312
        %v1315 = vtanh.pop %v1314
        %1317 = vrot.lane.b32.xlu0 %v1315, 64
        %v1318 = vpop.permute.xlu0 %1317
        %v1320 = vmul.f32 %v1302, %v1318
        %v1321 = vmul.f32 %v1320, %v670
        %v1322 = vsel %vm673, %v1321, 0.0
        %1323 = vadd.xlane.f32.xlu0 %v1322
        %v1324 = vpop.xlane.xlu0 %1323
        %vm1325 = vcmp.eq.s32.totalorder %v436, 3
        %v1326 = vsel %vm1325, %v1324, %v1110
        %v1327 = vadd.f32 %v406, %v1215
        %v1328 = vxor.u32 %v1327, 2147483648
        %v1329 = vmul.f32 %v1328, 1.442695
        %v1330 = vpow.pop %v1329
        %v1331 = vadd.f32 %v1330, 1.0
        %v1332 = vrcp.pop %v1331
        %v1333 = vmul.f32 1.0, %v1332
        %v1334 = vtanh.pop %v1327
        %v1335 = vmul.f32 %v1333, %v1129
        %1337 = vrot.lane.b32.xlu0 %v1334, 64
        %v1338 = vpop.permute.xlu0 %1337
        %v1340 = vmul.f32 %v1333, %v1338
        %1342 = vrot.lane.b32.xlu0 %v1340, 32
        %v1343 = vpop.permute.xlu0 %1342
        %v1345 = vadd.f32 %v1335, %v1343
        %v1346 = vtanh.pop %v1345
        %1348 = vrot.lane.b32.xlu0 %v1346, 64
        %v1349 = vpop.permute.xlu0 %1348
        %v1351 = vmul.f32 %v1333, %v1349
        %1353 = vrot.lane.b32.xlu0 %v1351, 32
        %v1354 = vpop.permute.xlu0 %1353
        %1357 = vrot.lane.b32.xlu0 %v1320, 32
        %v1358 = vpop.permute.xlu0 %1357
        %v1360 = vsel %vm335, %v1354, %v1358
        %v1362 = vsel %vm478, %v1360, 0
        %1364 = vmatprep.subr.mxu0 %v443
        %1365 = vmatpush1.msra.mxu0 %v442
        %1366 = vmatprep.subr.mxu0 %v446
        %1367 = vmatpush1.msra.mxu0 %v445
        %1368 = vmatprep.subr.mxu0 %v449
        %1369 = vmatpush1.msra.mxu0 %v448
        %1370 = vmatprep.subr.mxu0 %v452
        %1371 = vmatpush1.msra.mxu0 %v451
        %1372 = vmatprep.subr.mxu0 %v455
        %1373 = vmatpush1.msra.mxu0 %v454
        %1374 = vmatprep.subr.mxu0 %v458
        %1375 = vmatpush1.msra.mxu0 %v457
        %1376 = vmatprep.subr.mxu0 %v461
        %1377 = vmatpush1.msra.mxu0 %v460
        %1378 = vmatprep.subr.mxu0 %v464
        %1379 = vmatpush1.msra.mxu0 %v463
        %1380 = vmatprep.subr.mxu0 %v467
        %1381 = vmatpush1.msra.mxu0 %v466
        %1382 = vmatprep.subr.mxu0 %v470
        %1383 = vmatpush1.msra.mxu0 %v469
        %1384 = vmatprep.subr.mxu0 %v473
        %1385 = vmatpush1.msra.mxu0 %v472
        %1386 = vmatprep.subr.mxu0 %v476
        %1387 = vmatpush1.msra.mxu0 %v475
        %1388 = vmatprep.subr.mxu0 0.0
        %1389 = vmatpush1.msra.mxu0 0.0
        %1390 = vmatprep.subr.mxu0 0.0
        %1391 = vmatpush1.msra.mxu0 0.0
        %1392 = vmatprep.subr.mxu0 0.0
        %1393 = vmatpush1.msra.mxu0 0.0
        %1394 = vmatprep.subr.mxu0 0.0
        %1395 = vmatpush1.msra.mxu0 0.0
        %1396 = vmatprep.subr.mxu0 0.0
        %1397 = vmatpush1.msra.mxu0 0.0
        %1398 = vmatprep.subr.mxu0 0.0
        %1399 = vmatpush1.msra.mxu0 0.0
        %1400 = vmatprep.subr.mxu0 0.0
        %1401 = vmatpush1.msra.mxu0 0.0
        %1402 = vmatprep.subr.mxu0 0.0
        %1403 = vmatpush1.msra.mxu0 0.0
        %1404 = vmatprep.subr.mxu0 0.0
        %1405 = vmatpush1.msra.mxu0 0.0
        %1406 = vmatprep.subr.mxu0 0.0
        %1407 = vmatpush1.msra.mxu0 0.0
        %1408 = vmatprep.subr.mxu0 0.0
        %1409 = vmatpush1.msra.mxu0 0.0
        %1410 = vmatprep.subr.mxu0 0.0
        %1411 = vmatpush1.msra.mxu0 0.0
        %1412 = vmatprep.subr.mxu0 0.0
        %1413 = vmatpush1.msra.mxu0 0.0
        %1414 = vmatprep.subr.mxu0 0.0
        %1415 = vmatpush1.msra.mxu0 0.0
        %1416 = vmatprep.subr.mxu0 0.0
        %1417 = vmatpush1.msra.mxu0 0.0
        %1418 = vmatprep.subr.mxu0 0.0
        %1419 = vmatpush1.msra.mxu0 0.0
        %1420 = vmatprep.subr.mxu0 0.0
        %1421 = vmatpush1.msra.mxu0 0.0
        %1422 = vmatprep.subr.mxu0 0.0
        %1423 = vmatpush1.msra.mxu0 0.0
        %1424 = vmatprep.subr.mxu0 0.0
        %1425 = vmatpush1.msra.mxu0 0.0
        %1426 = vmatprep.subr.mxu0 0.0
        %1427 = vmatpush1.msra.mxu0 0.0
        %1428 = vmatprep.mubr.f32.mxu0 0.0
        %1429 = vmatmul.mubr.f32.gmra.mrb[0].mxu0 %v1362
        %v1430 = vpop.f32.mrb[0].mxu0
        %v1431 = vadd.f32 0.0, %v1430
        %v1432 = vpop.f32.mrb[0].mxu0
        %v1433 = vadd.f32 0.0, %v1432
        %1434 = vdwg.mxu0
        %1435 = vmatprep.subr.mxu0 0.0
        %1436 = vmatpush1.msra.mxu0 %v444
        %1437 = vmatprep.subr.mxu0 0.0
        %1438 = vmatpush1.msra.mxu0 %v447
        %1439 = vmatprep.subr.mxu0 0.0
        %1440 = vmatpush1.msra.mxu0 %v450
        %1441 = vmatprep.subr.mxu0 0.0
        %1442 = vmatpush1.msra.mxu0 %v453
        %1443 = vmatprep.subr.mxu0 0.0
        %1444 = vmatpush1.msra.mxu0 %v456
        %1445 = vmatprep.subr.mxu0 0.0
        %1446 = vmatpush1.msra.mxu0 %v459
        %1447 = vmatprep.subr.mxu0 0.0
        %1448 = vmatpush1.msra.mxu0 %v462
        %1449 = vmatprep.subr.mxu0 0.0
        %1450 = vmatpush1.msra.mxu0 %v465
        %1451 = vmatprep.subr.mxu0 0.0
        %1452 = vmatpush1.msra.mxu0 %v468
        %1453 = vmatprep.subr.mxu0 0.0
        %1454 = vmatpush1.msra.mxu0 %v471
        %1455 = vmatprep.subr.mxu0 0.0
        %1456 = vmatpush1.msra.mxu0 %v474
        %1457 = vmatprep.subr.mxu0 0.0
        %1458 = vmatpush1.msra.mxu0 %v477
        %1459 = vmatprep.subr.mxu0 0.0
        %1460 = vmatpush1.msra.mxu0 0.0
        %1461 = vmatprep.subr.mxu0 0.0
        %1462 = vmatpush1.msra.mxu0 0.0
        %1463 = vmatprep.subr.mxu0 0.0
        %1464 = vmatpush1.msra.mxu0 0.0
        %1465 = vmatprep.subr.mxu0 0.0
        %1466 = vmatpush1.msra.mxu0 0.0
        %1467 = vmatprep.subr.mxu0 0.0
        %1468 = vmatpush1.msra.mxu0 0.0
        %1469 = vmatprep.subr.mxu0 0.0
        %1470 = vmatpush1.msra.mxu0 0.0
        %1471 = vmatprep.subr.mxu0 0.0
        %1472 = vmatpush1.msra.mxu0 0.0
        %1473 = vmatprep.subr.mxu0 0.0
        %1474 = vmatpush1.msra.mxu0 0.0
        %1475 = vmatprep.subr.mxu0 0.0
        %1476 = vmatpush1.msra.mxu0 0.0
        %1477 = vmatprep.subr.mxu0 0.0
        %1478 = vmatpush1.msra.mxu0 0.0
        %1479 = vmatprep.subr.mxu0 0.0
        %1480 = vmatpush1.msra.mxu0 0.0
        %1481 = vmatprep.subr.mxu0 0.0
        %1482 = vmatpush1.msra.mxu0 0.0
        %1483 = vmatprep.subr.mxu0 0.0
        %1484 = vmatpush1.msra.mxu0 0.0
        %1485 = vmatprep.subr.mxu0 0.0
        %1486 = vmatpush1.msra.mxu0 0.0
        %1487 = vmatprep.subr.mxu0 0.0
        %1488 = vmatpush1.msra.mxu0 0.0
        %1489 = vmatprep.subr.mxu0 0.0
        %1490 = vmatpush1.msra.mxu0 0.0
        %1491 = vmatprep.subr.mxu0 0.0
        %1492 = vmatpush1.msra.mxu0 0.0
        %1493 = vmatprep.subr.mxu0 0.0
        %1494 = vmatpush1.msra.mxu0 0.0
        %1495 = vmatprep.subr.mxu0 0.0
        %1496 = vmatpush1.msra.mxu0 0.0
        %1497 = vmatprep.subr.mxu0 0.0
        %1498 = vmatpush1.msra.mxu0 0.0
        %1499 = vmatprep.mubr.f32.mxu0 0.0
        %1500 = vmatmul.mubr.f32.gmra.mrb[0].mxu0 %v1362
        %v1501 = vpop.f32.mrb[0].mxu0
        %v1502 = vadd.f32 0.0, %v1501
        %v1503 = vpop.f32.mrb[0].mxu0
        %1504 = vdwg.mxu0
        %v1505 = vadd.f32 %v1433, %v627
        %v1506 = vadd.f32 %v1502, %v631
        %v1507 = vxor.u32 %v1505, 2147483648
        %v1508 = vxor.u32 %v1506, 2147483648
        %v1509 = vmul.f32 %v1507, 1.442695
        %v1510 = vpow.pop %v1509
        %v1511 = vmul.f32 %v1508, 1.442695
        %v1512 = vpow.pop %v1511
        %v1513 = vadd.f32 %v1510, 1.0
        %v1514 = vadd.f32 %v1512, 1.0
        %v1515 = vrcp.pop %v1513
        %v1516 = vmul.f32 1.0, %v1515
        %v1517 = vrcp.pop %v1514
        %v1518 = vmul.f32 1.0, %v1517
        %v1519 = vtanh.pop %v1506
        %v1520 = vmul.f32 %v1516, %v1314
        %1522 = vrot.lane.b32.xlu0 %v1519, 64
        %v1523 = vpop.permute.xlu0 %1522
        %v1525 = vmul.f32 %v1516, %v1523
        %1527 = vrot.lane.b32.xlu0 %v1525, 64
        %v1528 = vpop.permute.xlu0 %1527
        %v1530 = vadd.f32 %v1520, %v1528
        %v1531 = vtanh.pop %v1530
        %1533 = vrot.lane.b32.xlu0 %v1531, 64
        %v1534 = vpop.permute.xlu0 %1533
        %v1536 = vmul.f32 %v1518, %v1534
        %v1537 = vmul.f32 %v1536, %v670
        %v1538 = vsel %vm673, %v1537, 0.0
        %1539 = vadd.xlane.f32.xlu0 %v1538
        %v1540 = vpop.xlane.xlu0 %1539
        %vm1541 = vcmp.eq.s32.totalorder %v436, 4
        %v1542 = vsel %vm1541, %v1540, %v1326
        %v1543 = vadd.f32 %v406, %v1431
        %v1544 = vxor.u32 %v1543, 2147483648
        %v1545 = vmul.f32 %v1544, 1.442695
        %v1546 = vpow.pop %v1545
        %v1547 = vadd.f32 %v1546, 1.0
        %v1548 = vrcp.pop %v1547
        %v1549 = vmul.f32 1.0, %v1548
        %v1550 = vtanh.pop %v1543
        %v1551 = vmul.f32 %v1549, %v1345
        %1553 = vrot.lane.b32.xlu0 %v1550, 64
        %v1554 = vpop.permute.xlu0 %1553
        %v1556 = vmul.f32 %v1549, %v1554
        %1558 = vrot.lane.b32.xlu0 %v1556, 32
        %v1559 = vpop.permute.xlu0 %1558
        %v1561 = vadd.f32 %v1551, %v1559
        %v1562 = vtanh.pop %v1561
        %1564 = vrot.lane.b32.xlu0 %v1562, 64
        %v1565 = vpop.permute.xlu0 %1564
        %v1567 = vmul.f32 %v1549, %v1565
        %1569 = vrot.lane.b32.xlu0 %v1567, 32
        %v1570 = vpop.permute.xlu0 %1569
        %1573 = vrot.lane.b32.xlu0 %v1536, 32
        %v1574 = vpop.permute.xlu0 %1573
        %v1576 = vsel %vm335, %v1570, %v1574
        %v1578 = vsel %vm478, %v1576, 0
        %1580 = vmatprep.subr.mxu0 %v443
        %1581 = vmatpush1.msra.mxu0 %v442
        %1582 = vmatprep.subr.mxu0 %v446
        %1583 = vmatpush1.msra.mxu0 %v445
        %1584 = vmatprep.subr.mxu0 %v449
        %1585 = vmatpush1.msra.mxu0 %v448
        %1586 = vmatprep.subr.mxu0 %v452
        %1587 = vmatpush1.msra.mxu0 %v451
        %1588 = vmatprep.subr.mxu0 %v455
        %1589 = vmatpush1.msra.mxu0 %v454
        %1590 = vmatprep.subr.mxu0 %v458
        %1591 = vmatpush1.msra.mxu0 %v457
        %1592 = vmatprep.subr.mxu0 %v461
        %1593 = vmatpush1.msra.mxu0 %v460
        %1594 = vmatprep.subr.mxu0 %v464
        %1595 = vmatpush1.msra.mxu0 %v463
        %1596 = vmatprep.subr.mxu0 %v467
        %1597 = vmatpush1.msra.mxu0 %v466
        %1598 = vmatprep.subr.mxu0 %v470
        %1599 = vmatpush1.msra.mxu0 %v469
        %1600 = vmatprep.subr.mxu0 %v473
        %1601 = vmatpush1.msra.mxu0 %v472
        %1602 = vmatprep.subr.mxu0 %v476
        %1603 = vmatpush1.msra.mxu0 %v475
        %1604 = vmatprep.subr.mxu0 0.0
        %1605 = vmatpush1.msra.mxu0 0.0
        %1606 = vmatprep.subr.mxu0 0.0
        %1607 = vmatpush1.msra.mxu0 0.0
        %1608 = vmatprep.subr.mxu0 0.0
        %1609 = vmatpush1.msra.mxu0 0.0
        %1610 = vmatprep.subr.mxu0 0.0
        %1611 = vmatpush1.msra.mxu0 0.0
        %1612 = vmatprep.subr.mxu0 0.0
        %1613 = vmatpush1.msra.mxu0 0.0
        %1614 = vmatprep.subr.mxu0 0.0
        %1615 = vmatpush1.msra.mxu0 0.0
        %1616 = vmatprep.subr.mxu0 0.0
        %1617 = vmatpush1.msra.mxu0 0.0
        %1618 = vmatprep.subr.mxu0 0.0
        %1619 = vmatpush1.msra.mxu0 0.0
        %1620 = vmatprep.subr.mxu0 0.0
        %1621 = vmatpush1.msra.mxu0 0.0
        %1622 = vmatprep.subr.mxu0 0.0
        %1623 = vmatpush1.msra.mxu0 0.0
        %1624 = vmatprep.subr.mxu0 0.0
        %1625 = vmatpush1.msra.mxu0 0.0
        %1626 = vmatprep.subr.mxu0 0.0
        %1627 = vmatpush1.msra.mxu0 0.0
        %1628 = vmatprep.subr.mxu0 0.0
        %1629 = vmatpush1.msra.mxu0 0.0
        %1630 = vmatprep.subr.mxu0 0.0
        %1631 = vmatpush1.msra.mxu0 0.0
        %1632 = vmatprep.subr.mxu0 0.0
        %1633 = vmatpush1.msra.mxu0 0.0
        %1634 = vmatprep.subr.mxu0 0.0
        %1635 = vmatpush1.msra.mxu0 0.0
        %1636 = vmatprep.subr.mxu0 0.0
        %1637 = vmatpush1.msra.mxu0 0.0
        %1638 = vmatprep.subr.mxu0 0.0
        %1639 = vmatpush1.msra.mxu0 0.0
        %1640 = vmatprep.subr.mxu0 0.0
        %1641 = vmatpush1.msra.mxu0 0.0
        %1642 = vmatprep.subr.mxu0 0.0
        %1643 = vmatpush1.msra.mxu0 0.0
        %1644 = vmatprep.mubr.f32.mxu0 0.0
        %1645 = vmatmul.mubr.f32.gmra.mrb[0].mxu0 %v1578
        %v1646 = vpop.f32.mrb[0].mxu0
        %v1647 = vadd.f32 0.0, %v1646
        %v1648 = vpop.f32.mrb[0].mxu0
        %v1649 = vadd.f32 0.0, %v1648
        %1650 = vdwg.mxu0
        %1651 = vmatprep.subr.mxu0 0.0
        %1652 = vmatpush1.msra.mxu0 %v444
        %1653 = vmatprep.subr.mxu0 0.0
        %1654 = vmatpush1.msra.mxu0 %v447
        %1655 = vmatprep.subr.mxu0 0.0
        %1656 = vmatpush1.msra.mxu0 %v450
        %1657 = vmatprep.subr.mxu0 0.0
        %1658 = vmatpush1.msra.mxu0 %v453
        %1659 = vmatprep.subr.mxu0 0.0
        %1660 = vmatpush1.msra.mxu0 %v456
        %1661 = vmatprep.subr.mxu0 0.0
        %1662 = vmatpush1.msra.mxu0 %v459
        %1663 = vmatprep.subr.mxu0 0.0
        %1664 = vmatpush1.msra.mxu0 %v462
        %1665 = vmatprep.subr.mxu0 0.0
        %1666 = vmatpush1.msra.mxu0 %v465
        %1667 = vmatprep.subr.mxu0 0.0
        %1668 = vmatpush1.msra.mxu0 %v468
        %1669 = vmatprep.subr.mxu0 0.0
        %1670 = vmatpush1.msra.mxu0 %v471
        %1671 = vmatprep.subr.mxu0 0.0
        %1672 = vmatpush1.msra.mxu0 %v474
        %1673 = vmatprep.subr.mxu0 0.0
        %1674 = vmatpush1.msra.mxu0 %v477
        %1675 = vmatprep.subr.mxu0 0.0
        %1676 = vmatpush1.msra.mxu0 0.0
        %1677 = vmatprep.subr.mxu0 0.0
        %1678 = vmatpush1.msra.mxu0 0.0
        %1679 = vmatprep.subr.mxu0 0.0
        %1680 = vmatpush1.msra.mxu0 0.0
        %1681 = vmatprep.subr.mxu0 0.0
        %1682 = vmatpush1.msra.mxu0 0.0
        %1683 = vmatprep.subr.mxu0 0.0
        %1684 = vmatpush1.msra.mxu0 0.0
        %1685 = vmatprep.subr.mxu0 0.0
        %1686 = vmatpush1.msra.mxu0 0.0
        %1687 = vmatprep.subr.mxu0 0.0
        %1688 = vmatpush1.msra.mxu0 0.0
        %1689 = vmatprep.subr.mxu0 0.0
        %1690 = vmatpush1.msra.mxu0 0.0
        %1691 = vmatprep.subr.mxu0 0.0
        %1692 = vmatpush1.msra.mxu0 0.0
        %1693 = vmatprep.subr.mxu0 0.0
        %1694 = vmatpush1.msra.mxu0 0.0
        %1695 = vmatprep.subr.mxu0 0.0
        %1696 = vmatpush1.msra.mxu0 0.0
        %1697 = vmatprep.subr.mxu0 0.0
        %1698 = vmatpush1.msra.mxu0 0.0
        %1699 = vmatprep.subr.mxu0 0.0
        %1700 = vmatpush1.msra.mxu0 0.0
        %1701 = vmatprep.subr.mxu0 0.0
        %1702 = vmatpush1.msra.mxu0 0.0
        %1703 = vmatprep.subr.mxu0 0.0
        %1704 = vmatpush1.msra.mxu0 0.0
        %1705 = vmatprep.subr.mxu0 0.0
        %1706 = vmatpush1.msra.mxu0 0.0
        %1707 = vmatprep.subr.mxu0 0.0
        %1708 = vmatpush1.msra.mxu0 0.0
        %1709 = vmatprep.subr.mxu0 0.0
        %1710 = vmatpush1.msra.mxu0 0.0
        %1711 = vmatprep.subr.mxu0 0.0
        %1712 = vmatpush1.msra.mxu0 0.0
        %1713 = vmatprep.subr.mxu0 0.0
        %1714 = vmatpush1.msra.mxu0 0.0
        %1715 = vmatprep.mubr.f32.mxu0 0.0
        %1716 = vmatmul.mubr.f32.gmra.mrb[0].mxu0 %v1578
        %v1717 = vpop.f32.mrb[0].mxu0
        %v1718 = vadd.f32 0.0, %v1717
        %v1719 = vpop.f32.mrb[0].mxu0
        %1720 = vdwg.mxu0
        %v1721 = vadd.f32 %v1649, %v627
        %v1722 = vadd.f32 %v1718, %v631
        %v1723 = vxor.u32 %v1721, 2147483648
        %v1724 = vxor.u32 %v1722, 2147483648
        %v1725 = vmul.f32 %v1723, 1.442695
        %v1726 = vpow.pop %v1725
        %v1727 = vmul.f32 %v1724, 1.442695
        %v1728 = vpow.pop %v1727
        %v1729 = vadd.f32 %v1726, 1.0
        %v1730 = vadd.f32 %v1728, 1.0
        %v1731 = vrcp.pop %v1729
        %v1732 = vmul.f32 1.0, %v1731
        %v1733 = vrcp.pop %v1730
        %v1734 = vmul.f32 1.0, %v1733
        %v1735 = vtanh.pop %v1722
        %v1736 = vmul.f32 %v1732, %v1530
        %1738 = vrot.lane.b32.xlu0 %v1735, 64
        %v1739 = vpop.permute.xlu0 %1738
        %v1741 = vmul.f32 %v1732, %v1739
        %1743 = vrot.lane.b32.xlu0 %v1741, 64
        %v1744 = vpop.permute.xlu0 %1743
        %v1746 = vadd.f32 %v1736, %v1744
        %v1747 = vtanh.pop %v1746
        %1749 = vrot.lane.b32.xlu0 %v1747, 64
        %v1750 = vpop.permute.xlu0 %1749
        %v1752 = vmul.f32 %v1734, %v1750
        %v1753 = vmul.f32 %v1752, %v670
        %v1754 = vsel %vm673, %v1753, 0.0
        %1755 = vadd.xlane.f32.xlu0 %v1754
        %v1756 = vpop.xlane.xlu0 %1755
        %vm1757 = vcmp.eq.s32.totalorder %v436, 5
        %v1758 = vsel %vm1757, %v1756, %v1542
        %v1759 = vadd.f32 %v406, %v1647
        %v1760 = vxor.u32 %v1759, 2147483648
        %v1761 = vmul.f32 %v1760, 1.442695
        %v1762 = vpow.pop %v1761
        %v1763 = vadd.f32 %v1762, 1.0
        %v1764 = vrcp.pop %v1763
        %v1765 = vmul.f32 1.0, %v1764
        %v1766 = vtanh.pop %v1759
        %v1767 = vmul.f32 %v1765, %v1561
        %1769 = vrot.lane.b32.xlu0 %v1766, 64
        %v1770 = vpop.permute.xlu0 %1769
        %v1772 = vmul.f32 %v1765, %v1770
        %1774 = vrot.lane.b32.xlu0 %v1772, 32
        %v1775 = vpop.permute.xlu0 %1774
        %v1777 = vadd.f32 %v1767, %v1775
        %v1778 = vtanh.pop %v1777
        %1780 = vrot.lane.b32.xlu0 %v1778, 64
        %v1781 = vpop.permute.xlu0 %1780
        %v1783 = vmul.f32 %v1765, %v1781
        %1785 = vrot.lane.b32.xlu0 %v1783, 32
        %v1786 = vpop.permute.xlu0 %1785
        %1789 = vrot.lane.b32.xlu0 %v1752, 32
        %v1790 = vpop.permute.xlu0 %1789
        %v1792 = vsel %vm335, %v1786, %v1790
        %v1794 = vsel %vm478, %v1792, 0
        %1796 = vmatprep.subr.mxu0 %v443
        %1797 = vmatpush1.msra.mxu0 %v442
        %1798 = vmatprep.subr.mxu0 %v446
        %1799 = vmatpush1.msra.mxu0 %v445
        %1800 = vmatprep.subr.mxu0 %v449
        %1801 = vmatpush1.msra.mxu0 %v448
        %1802 = vmatprep.subr.mxu0 %v452
        %1803 = vmatpush1.msra.mxu0 %v451
        %1804 = vmatprep.subr.mxu0 %v455
        %1805 = vmatpush1.msra.mxu0 %v454
        %1806 = vmatprep.subr.mxu0 %v458
        %1807 = vmatpush1.msra.mxu0 %v457
        %1808 = vmatprep.subr.mxu0 %v461
        %1809 = vmatpush1.msra.mxu0 %v460
        %1810 = vmatprep.subr.mxu0 %v464
        %1811 = vmatpush1.msra.mxu0 %v463
        %1812 = vmatprep.subr.mxu0 %v467
        %1813 = vmatpush1.msra.mxu0 %v466
        %1814 = vmatprep.subr.mxu0 %v470
        %1815 = vmatpush1.msra.mxu0 %v469
        %1816 = vmatprep.subr.mxu0 %v473
        %1817 = vmatpush1.msra.mxu0 %v472
        %1818 = vmatprep.subr.mxu0 %v476
        %1819 = vmatpush1.msra.mxu0 %v475
        %1820 = vmatprep.subr.mxu0 0.0
        %1821 = vmatpush1.msra.mxu0 0.0
        %1822 = vmatprep.subr.mxu0 0.0
        %1823 = vmatpush1.msra.mxu0 0.0
        %1824 = vmatprep.subr.mxu0 0.0
        %1825 = vmatpush1.msra.mxu0 0.0
        %1826 = vmatprep.subr.mxu0 0.0
        %1827 = vmatpush1.msra.mxu0 0.0
        %1828 = vmatprep.subr.mxu0 0.0
        %1829 = vmatpush1.msra.mxu0 0.0
        %1830 = vmatprep.subr.mxu0 0.0
        %1831 = vmatpush1.msra.mxu0 0.0
        %1832 = vmatprep.subr.mxu0 0.0
        %1833 = vmatpush1.msra.mxu0 0.0
        %1834 = vmatprep.subr.mxu0 0.0
        %1835 = vmatpush1.msra.mxu0 0.0
        %1836 = vmatprep.subr.mxu0 0.0
        %1837 = vmatpush1.msra.mxu0 0.0
        %1838 = vmatprep.subr.mxu0 0.0
        %1839 = vmatpush1.msra.mxu0 0.0
        %1840 = vmatprep.subr.mxu0 0.0
        %1841 = vmatpush1.msra.mxu0 0.0
        %1842 = vmatprep.subr.mxu0 0.0
        %1843 = vmatpush1.msra.mxu0 0.0
        %1844 = vmatprep.subr.mxu0 0.0
        %1845 = vmatpush1.msra.mxu0 0.0
        %1846 = vmatprep.subr.mxu0 0.0
        %1847 = vmatpush1.msra.mxu0 0.0
        %1848 = vmatprep.subr.mxu0 0.0
        %1849 = vmatpush1.msra.mxu0 0.0
        %1850 = vmatprep.subr.mxu0 0.0
        %1851 = vmatpush1.msra.mxu0 0.0
        %1852 = vmatprep.subr.mxu0 0.0
        %1853 = vmatpush1.msra.mxu0 0.0
        %1854 = vmatprep.subr.mxu0 0.0
        %1855 = vmatpush1.msra.mxu0 0.0
        %1856 = vmatprep.subr.mxu0 0.0
        %1857 = vmatpush1.msra.mxu0 0.0
        %1858 = vmatprep.subr.mxu0 0.0
        %1859 = vmatpush1.msra.mxu0 0.0
        %1860 = vmatprep.mubr.f32.mxu0 0.0
        %1861 = vmatmul.mubr.f32.gmra.mrb[0].mxu0 %v1794
        %v1862 = vpop.f32.mrb[0].mxu0
        %v1863 = vadd.f32 0.0, %v1862
        %v1864 = vpop.f32.mrb[0].mxu0
        %v1865 = vadd.f32 0.0, %v1864
        %1866 = vdwg.mxu0
        %1867 = vmatprep.subr.mxu0 0.0
        %1868 = vmatpush1.msra.mxu0 %v444
        %1869 = vmatprep.subr.mxu0 0.0
        %1870 = vmatpush1.msra.mxu0 %v447
        %1871 = vmatprep.subr.mxu0 0.0
        %1872 = vmatpush1.msra.mxu0 %v450
        %1873 = vmatprep.subr.mxu0 0.0
        %1874 = vmatpush1.msra.mxu0 %v453
        %1875 = vmatprep.subr.mxu0 0.0
        %1876 = vmatpush1.msra.mxu0 %v456
        %1877 = vmatprep.subr.mxu0 0.0
        %1878 = vmatpush1.msra.mxu0 %v459
        %1879 = vmatprep.subr.mxu0 0.0
        %1880 = vmatpush1.msra.mxu0 %v462
        %1881 = vmatprep.subr.mxu0 0.0
        %1882 = vmatpush1.msra.mxu0 %v465
        %1883 = vmatprep.subr.mxu0 0.0
        %1884 = vmatpush1.msra.mxu0 %v468
        %1885 = vmatprep.subr.mxu0 0.0
        %1886 = vmatpush1.msra.mxu0 %v471
        %1887 = vmatprep.subr.mxu0 0.0
        %1888 = vmatpush1.msra.mxu0 %v474
        %1889 = vmatprep.subr.mxu0 0.0
        %1890 = vmatpush1.msra.mxu0 %v477
        %1891 = vmatprep.subr.mxu0 0.0
        %1892 = vmatpush1.msra.mxu0 0.0
        %1893 = vmatprep.subr.mxu0 0.0
        %1894 = vmatpush1.msra.mxu0 0.0
        %1895 = vmatprep.subr.mxu0 0.0
        %1896 = vmatpush1.msra.mxu0 0.0
        %1897 = vmatprep.subr.mxu0 0.0
        %1898 = vmatpush1.msra.mxu0 0.0
        %1899 = vmatprep.subr.mxu0 0.0
        %1900 = vmatpush1.msra.mxu0 0.0
        %1901 = vmatprep.subr.mxu0 0.0
        %1902 = vmatpush1.msra.mxu0 0.0
        %1903 = vmatprep.subr.mxu0 0.0
        %1904 = vmatpush1.msra.mxu0 0.0
        %1905 = vmatprep.subr.mxu0 0.0
        %1906 = vmatpush1.msra.mxu0 0.0
        %1907 = vmatprep.subr.mxu0 0.0
        %1908 = vmatpush1.msra.mxu0 0.0
        %1909 = vmatprep.subr.mxu0 0.0
        %1910 = vmatpush1.msra.mxu0 0.0
        %1911 = vmatprep.subr.mxu0 0.0
        %1912 = vmatpush1.msra.mxu0 0.0
        %1913 = vmatprep.subr.mxu0 0.0
        %1914 = vmatpush1.msra.mxu0 0.0
        %1915 = vmatprep.subr.mxu0 0.0
        %1916 = vmatpush1.msra.mxu0 0.0
        %1917 = vmatprep.subr.mxu0 0.0
        %1918 = vmatpush1.msra.mxu0 0.0
        %1919 = vmatprep.subr.mxu0 0.0
        %1920 = vmatpush1.msra.mxu0 0.0
        %1921 = vmatprep.subr.mxu0 0.0
        %1922 = vmatpush1.msra.mxu0 0.0
        %1923 = vmatprep.subr.mxu0 0.0
        %1924 = vmatpush1.msra.mxu0 0.0
        %1925 = vmatprep.subr.mxu0 0.0
        %1926 = vmatpush1.msra.mxu0 0.0
        %1927 = vmatprep.subr.mxu0 0.0
        %1928 = vmatpush1.msra.mxu0 0.0
        %1929 = vmatprep.subr.mxu0 0.0
        %1930 = vmatpush1.msra.mxu0 0.0
        %1931 = vmatprep.mubr.f32.mxu0 0.0
        %1932 = vmatmul.mubr.f32.gmra.mrb[0].mxu0 %v1794
        %v1933 = vpop.f32.mrb[0].mxu0
        %v1934 = vadd.f32 0.0, %v1933
        %v1935 = vpop.f32.mrb[0].mxu0
        %1936 = vdwg.mxu0
        %v1937 = vadd.f32 %v1865, %v627
        %v1938 = vadd.f32 %v1934, %v631
        %v1939 = vxor.u32 %v1937, 2147483648
        %v1940 = vxor.u32 %v1938, 2147483648
        %v1941 = vmul.f32 %v1939, 1.442695
        %v1942 = vpow.pop %v1941
        %v1943 = vmul.f32 %v1940, 1.442695
        %v1944 = vpow.pop %v1943
        %v1945 = vadd.f32 %v1942, 1.0
        %v1946 = vadd.f32 %v1944, 1.0
        %v1947 = vrcp.pop %v1945
        %v1948 = vmul.f32 1.0, %v1947
        %v1949 = vrcp.pop %v1946
        %v1950 = vmul.f32 1.0, %v1949
        %v1951 = vtanh.pop %v1938
        %v1952 = vmul.f32 %v1948, %v1746
        %1954 = vrot.lane.b32.xlu0 %v1951, 64
        %v1955 = vpop.permute.xlu0 %1954
        %v1957 = vmul.f32 %v1948, %v1955
        %1959 = vrot.lane.b32.xlu0 %v1957, 64
        %v1960 = vpop.permute.xlu0 %1959
        %v1962 = vadd.f32 %v1952, %v1960
        %v1963 = vtanh.pop %v1962
        %1965 = vrot.lane.b32.xlu0 %v1963, 64
        %v1966 = vpop.permute.xlu0 %1965
        %v1968 = vmul.f32 %v1950, %v1966
        %v1969 = vmul.f32 %v1968, %v670
        %v1970 = vsel %vm673, %v1969, 0.0
        %1971 = vadd.xlane.f32.xlu0 %v1970
        %v1972 = vpop.xlane.xlu0 %1971
        %vm1973 = vcmp.eq.s32.totalorder %v436, 6
        %v1974 = vsel %vm1973, %v1972, %v1758
        %v1975 = vadd.f32 %v406, %v1863
        %v1976 = vxor.u32 %v1975, 2147483648
        %v1977 = vmul.f32 %v1976, 1.442695
        %v1978 = vpow.pop %v1977
        %v1979 = vadd.f32 %v1978, 1.0
        %v1980 = vrcp.pop %v1979
        %v1981 = vmul.f32 1.0, %v1980
        %v1982 = vtanh.pop %v1975
        %v1983 = vmul.f32 %v1981, %v1777
        %1985 = vrot.lane.b32.xlu0 %v1982, 64
        %v1986 = vpop.permute.xlu0 %1985
        %v1988 = vmul.f32 %v1981, %v1986
        %1990 = vrot.lane.b32.xlu0 %v1988, 32
        %v1991 = vpop.permute.xlu0 %1990
        %v1993 = vadd.f32 %v1983, %v1991
        %v1994 = vtanh.pop %v1993
        %1996 = vrot.lane.b32.xlu0 %v1994, 64
        %v1997 = vpop.permute.xlu0 %1996
        %v1999 = vmul.f32 %v1981, %v1997
        %2001 = vrot.lane.b32.xlu0 %v1999, 32
        %v2002 = vpop.permute.xlu0 %2001
        %2005 = vrot.lane.b32.xlu0 %v1968, 32
        %v2006 = vpop.permute.xlu0 %2005
        %v2008 = vsel %vm335, %v2002, %v2006
        %v2010 = vsel %vm478, %v2008, 0
        %2012 = vmatprep.subr.mxu0 %v443
        %2013 = vmatpush1.msra.mxu0 %v442
        %2014 = vmatprep.subr.mxu0 %v446
        %2015 = vmatpush1.msra.mxu0 %v445
        %2016 = vmatprep.subr.mxu0 %v449
        %2017 = vmatpush1.msra.mxu0 %v448
        %2018 = vmatprep.subr.mxu0 %v452
        %2019 = vmatpush1.msra.mxu0 %v451
        %2020 = vmatprep.subr.mxu0 %v455
        %2021 = vmatpush1.msra.mxu0 %v454
        %2022 = vmatprep.subr.mxu0 %v458
        %2023 = vmatpush1.msra.mxu0 %v457
        %2024 = vmatprep.subr.mxu0 %v461
        %2025 = vmatpush1.msra.mxu0 %v460
        %2026 = vmatprep.subr.mxu0 %v464
        %2027 = vmatpush1.msra.mxu0 %v463
        %2028 = vmatprep.subr.mxu0 %v467
        %2029 = vmatpush1.msra.mxu0 %v466
        %2030 = vmatprep.subr.mxu0 %v470
        %2031 = vmatpush1.msra.mxu0 %v469
        %2032 = vmatprep.subr.mxu0 %v473
        %2033 = vmatpush1.msra.mxu0 %v472
        %2034 = vmatprep.subr.mxu0 %v476
        %2035 = vmatpush1.msra.mxu0 %v475
        %2036 = vmatprep.subr.mxu0 0.0
        %2037 = vmatpush1.msra.mxu0 0.0
        %2038 = vmatprep.subr.mxu0 0.0
        %2039 = vmatpush1.msra.mxu0 0.0
        %2040 = vmatprep.subr.mxu0 0.0
        %2041 = vmatpush1.msra.mxu0 0.0
        %2042 = vmatprep.subr.mxu0 0.0
        %2043 = vmatpush1.msra.mxu0 0.0
        %2044 = vmatprep.subr.mxu0 0.0
        %2045 = vmatpush1.msra.mxu0 0.0
        %2046 = vmatprep.subr.mxu0 0.0
        %2047 = vmatpush1.msra.mxu0 0.0
        %2048 = vmatprep.subr.mxu0 0.0
        %2049 = vmatpush1.msra.mxu0 0.0
        %2050 = vmatprep.subr.mxu0 0.0
        %2051 = vmatpush1.msra.mxu0 0.0
        %2052 = vmatprep.subr.mxu0 0.0
        %2053 = vmatpush1.msra.mxu0 0.0
        %2054 = vmatprep.subr.mxu0 0.0
        %2055 = vmatpush1.msra.mxu0 0.0
        %2056 = vmatprep.subr.mxu0 0.0
        %2057 = vmatpush1.msra.mxu0 0.0
        %2058 = vmatprep.subr.mxu0 0.0
        %2059 = vmatpush1.msra.mxu0 0.0
        %2060 = vmatprep.subr.mxu0 0.0
        %2061 = vmatpush1.msra.mxu0 0.0
        %2062 = vmatprep.subr.mxu0 0.0
        %2063 = vmatpush1.msra.mxu0 0.0
        %2064 = vmatprep.subr.mxu0 0.0
        %2065 = vmatpush1.msra.mxu0 0.0
        %2066 = vmatprep.subr.mxu0 0.0
        %2067 = vmatpush1.msra.mxu0 0.0
        %2068 = vmatprep.subr.mxu0 0.0
        %2069 = vmatpush1.msra.mxu0 0.0
        %2070 = vmatprep.subr.mxu0 0.0
        %2071 = vmatpush1.msra.mxu0 0.0
        %2072 = vmatprep.subr.mxu0 0.0
        %2073 = vmatpush1.msra.mxu0 0.0
        %2074 = vmatprep.subr.mxu0 0.0
        %2075 = vmatpush1.msra.mxu0 0.0
        %2076 = vmatprep.mubr.f32.mxu0 0.0
        %2077 = vmatmul.mubr.f32.gmra.mrb[0].mxu0 %v2010
        %v2078 = vpop.f32.mrb[0].mxu0
        %v2079 = vpop.f32.mrb[0].mxu0
        %v2080 = vadd.f32 0.0, %v2079
        %2081 = vdwg.mxu0
        %2082 = vmatprep.subr.mxu0 0.0
        %2083 = vmatpush1.msra.mxu0 %v444
        %2084 = vmatprep.subr.mxu0 0.0
        %2085 = vmatpush1.msra.mxu0 %v447
        %2086 = vmatprep.subr.mxu0 0.0
        %2087 = vmatpush1.msra.mxu0 %v450
        %2088 = vmatprep.subr.mxu0 0.0
        %2089 = vmatpush1.msra.mxu0 %v453
        %2090 = vmatprep.subr.mxu0 0.0
        %2091 = vmatpush1.msra.mxu0 %v456
        %2092 = vmatprep.subr.mxu0 0.0
        %2093 = vmatpush1.msra.mxu0 %v459
        %2094 = vmatprep.subr.mxu0 0.0
        %2095 = vmatpush1.msra.mxu0 %v462
        %2096 = vmatprep.subr.mxu0 0.0
        %2097 = vmatpush1.msra.mxu0 %v465
        %2098 = vmatprep.subr.mxu0 0.0
        %2099 = vmatpush1.msra.mxu0 %v468
        %2100 = vmatprep.subr.mxu0 0.0
        %2101 = vmatpush1.msra.mxu0 %v471
        %2102 = vmatprep.subr.mxu0 0.0
        %2103 = vmatpush1.msra.mxu0 %v474
        %2104 = vmatprep.subr.mxu0 0.0
        %2105 = vmatpush1.msra.mxu0 %v477
        %2106 = vmatprep.subr.mxu0 0.0
        %2107 = vmatpush1.msra.mxu0 0.0
        %2108 = vmatprep.subr.mxu0 0.0
        %2109 = vmatpush1.msra.mxu0 0.0
        %2110 = vmatprep.subr.mxu0 0.0
        %2111 = vmatpush1.msra.mxu0 0.0
        %2112 = vmatprep.subr.mxu0 0.0
        %2113 = vmatpush1.msra.mxu0 0.0
        %2114 = vmatprep.subr.mxu0 0.0
        %2115 = vmatpush1.msra.mxu0 0.0
        %2116 = vmatprep.subr.mxu0 0.0
        %2117 = vmatpush1.msra.mxu0 0.0
        %2118 = vmatprep.subr.mxu0 0.0
        %2119 = vmatpush1.msra.mxu0 0.0
        %2120 = vmatprep.subr.mxu0 0.0
        %2121 = vmatpush1.msra.mxu0 0.0
        %2122 = vmatprep.subr.mxu0 0.0
        %2123 = vmatpush1.msra.mxu0 0.0
        %2124 = vmatprep.subr.mxu0 0.0
        %2125 = vmatpush1.msra.mxu0 0.0
        %2126 = vmatprep.subr.mxu0 0.0
        %2127 = vmatpush1.msra.mxu0 0.0
        %2128 = vmatprep.subr.mxu0 0.0
        %2129 = vmatpush1.msra.mxu0 0.0
        %2130 = vmatprep.subr.mxu0 0.0
        %2131 = vmatpush1.msra.mxu0 0.0
        %2132 = vmatprep.subr.mxu0 0.0
        %2133 = vmatpush1.msra.mxu0 0.0
        %2134 = vmatprep.subr.mxu0 0.0
        %2135 = vmatpush1.msra.mxu0 0.0
        %2136 = vmatprep.subr.mxu0 0.0
        %2137 = vmatpush1.msra.mxu0 0.0
        %2138 = vmatprep.subr.mxu0 0.0
        %2139 = vmatpush1.msra.mxu0 0.0
        %2140 = vmatprep.subr.mxu0 0.0
        %2141 = vmatpush1.msra.mxu0 0.0
        %2142 = vmatprep.subr.mxu0 0.0
        %2143 = vmatpush1.msra.mxu0 0.0
        %2144 = vmatprep.subr.mxu0 0.0
        %2145 = vmatpush1.msra.mxu0 0.0
        %2146 = vmatprep.mubr.f32.mxu0 0.0
        %2147 = vmatmul.mubr.f32.gmra.mrb[0].mxu0 %v2010
        %v2148 = vpop.f32.mrb[0].mxu0
        %v2149 = vadd.f32 0.0, %v2148
        %v2150 = vpop.f32.mrb[0].mxu0
        %2151 = vdwg.mxu0
        %v2152 = vadd.f32 %v2080, %v627
        %v2153 = vadd.f32 %v2149, %v631
        %v2154 = vxor.u32 %v2152, 2147483648
        %v2155 = vxor.u32 %v2153, 2147483648
        %v2156 = vmul.f32 %v2154, 1.442695
        %v2157 = vpow.pop %v2156
        %v2158 = vmul.f32 %v2155, 1.442695
        %v2159 = vpow.pop %v2158
        %v2160 = vadd.f32 %v2157, 1.0
        %v2161 = vadd.f32 %v2159, 1.0
        %v2162 = vrcp.pop %v2160
        %v2163 = vmul.f32 1.0, %v2162
        %v2164 = vrcp.pop %v2161
        %v2165 = vmul.f32 1.0, %v2164
        %v2166 = vtanh.pop %v2153
        %v2167 = vmul.f32 %v2163, %v1962
        %2169 = vrot.lane.b32.xlu0 %v2166, 64
        %v2170 = vpop.permute.xlu0 %2169
        %v2172 = vmul.f32 %v2163, %v2170
        %2174 = vrot.lane.b32.xlu0 %v2172, 64
        %v2175 = vpop.permute.xlu0 %2174
        %v2177 = vadd.f32 %v2167, %v2175
        %v2178 = vtanh.pop %v2177
        %2180 = vrot.lane.b32.xlu0 %v2178, 64
        %v2181 = vpop.permute.xlu0 %2180
        %v2183 = vmul.f32 %v2165, %v2181
        %v2184 = vmul.f32 %v2183, %v670
        %v2185 = vsel %vm673, %v2184, 0.0
        %2186 = vadd.xlane.f32.xlu0 %v2185
        %v2187 = vpop.xlane.xlu0 %2186
        %vm2188 = vcmp.eq.s32.totalorder %v436, 7
        %v2189 = vsel %vm2188, %v2187, %v1974
        %v2190 = vld [vmem:[%s6] sm:$0x1]
        %v2192 = vlaneseq
        %v2193 = vshrl.u32 %v2192, 7
        %v2194 = vsub.s32 0, %v2193
        %v2195 = vrot.slane %v2190, %v2194
        %v2197 = vadd.f32 %v2189, %v2195
        %2198 = vst [vmem:[%s322] sm:$0xff] %v2197
        %s2199 = sand.u32 %s185, 1
        %s2200 = scalar_lea.sflag [#allocation4], %s2199
        %s2201 = sand.u32 %s185, 1
        %s2202 = smul.addr %s2201, 8
        %s2203 = scalar_lea.vmem [#allocation8], %s2202
        // Predicated region
        $region61: #{tpu_custom_call.1} parent=47 // pred_check
          %p2204 = pneg %p195
        $region62: #{tpu_custom_call.1} parent=47 // pred_check_branch
          %2206 = sbr.rel (%p2204) target = $region64
        $region63: #{tpu_custom_call.1} parent=47 // pred_region
          %s2208 = ssub.s32 128, 128
          %2209 = vsyncadd %s2200, %s2208
          %s2210 = smul.addr %s25, 128
          %s2211 = scalar_lea.hbm %s7, %s2210
          %s2213 = sshll.u32 %s2203, 4
          %s2214 = int_to_ptr.vmem [resolvable:$true] %s2213
          %2216 = dma.vmem_to_hbm [thread:$0]  %s2214, 128, %s2211, %s2200
        $region64: #{tpu_custom_call.1} parent=47 // pred_fallthru
          _
      $region48: #{tpu_custom_call.1} parent=5 // pred_fallthru
        _
      %p2217 = scmp.le.s32.totalorder 2, %s20
      // Predicated region
      $region65: #{tpu_custom_call.1} parent=5 // pred_check
        %p2218 = pneg %p2217
      $region66: #{tpu_custom_call.1} parent=5 // pred_check_branch
        %2220 = sbr.rel (%p2218) target = $region68
      $region67: #{tpu_custom_call.1} parent=5 // pred_region
        %s2221 = ssub.s32 %s20, 2
        // Predicated region
        $region69: #{tpu_custom_call.1} parent=67 // pred_check
          %p2222 = pneg %p201
        $region70: #{tpu_custom_call.1} parent=67 // pred_check_branch
          %2224 = sbr.rel (%p2222) target = $region72
        $region71: #{tpu_custom_call.1} parent=67 // pred_region
          %s2225 = sand.u32 %s186, 1
          %s2226 = scalar_lea.sflag [#allocation4], %s2225
          %s2227 = sand.u32 %s186, 1
          %s2228 = smul.addr %s2227, 8
          %s2229 = scalar_lea.vmem [#allocation8], %s2228
          %2230 = dma.done %s2226, 128
        $region72: #{tpu_custom_call.1} parent=67 // pred_fallthru
          _
      $region68: #{tpu_custom_call.1} parent=5 // pred_fallthru
        _
    $region6: #{tpu_custom_call.1} parent=1 // loop_footer
      %s24 = sadd.s32 1, %s20
    $region7: #{tpu_custom_call.1} parent=1 // loop_footer_branch
      %19 = sbr.rel target = $region3
    $region8: #{tpu_custom_call.1} parent=1 // loop_exit
      _
    %2231 = vsyncpa [#allocation3], 1
    %s2232 = scalar_lea.sflag [#allocation3], 1
    %2233 = vsyncpa %s2232, 1
    %2234 = vsyncpa [#allocation6], 1
    %2235 = vsyncpa [#allocation4], 1
    %s2236 = scalar_lea.sflag [#allocation4], 1
    %2237 = vsyncpa %s2236, 1

</llo_original>
